<compile_context>
chip_gen: v6e
topology: v6e:2x2x1
jax: 0.10.0
libtpu: 0.0.40
codegen_flags: <defaults>
</compile_context>

<pallas_src>
import functools

import jax
import jax.numpy as jnp
from jax.experimental import pallas as pl
from jax.experimental.pallas import tpu as pltpu


# ---------------------------------------------------------------------------
# Fused BasicBlock kernel (one batch element per grid step)
# ---------------------------------------------------------------------------
def _basic_block_kernel(*refs, Ho, Wo, stride, dil, pad1, has_downsample):
    if has_downsample:
        (x_ref, w1_ref, b1_ref, w2_ref, b2_ref, wd_ref, o_ref, mid_ref) = refs
    else:
        (x_ref, w1_ref, b1_ref, w2_ref, b2_ref, o_ref, mid_ref) = refs
        wd_ref = None

    Cin = x_ref.shape[-1]
    Cout = w1_ref.shape[-1]
    M = Ho * Wo
    Hm, Wm = Ho + 2 * dil, Wo + 2 * dil

    def x_tap(oi, oj):
        # Contiguous static slice of the padded (phase-decomposed when strided) input.
        if stride == 1:
            return x_ref[oi:oi + Ho, oj:oj + Wo, :]
        p = (oi % stride) * stride + (oj % stride)
        return x_ref[p, oi // stride:oi // stride + Ho,
                     oj // stride:oj // stride + Wo, :]

    # ---- conv1 (BN scale folded into w1): ONE K = 9*Cin MXU dot ------------
    cols1 = jnp.concatenate(
        [x_tap(i * dil, j * dil).reshape(M, Cin)
         for i in range(3) for j in range(3)], axis=-1)            # (M, 9*Cin) bf16
    acc1 = jnp.dot(cols1, w1_ref[...],
                   preferred_element_type=jnp.float32) + b1_ref[...]
    mid = jnp.maximum(acc1, 0.0).astype(jnp.bfloat16)              # ReLU -> bf16

    # Stage the intermediate in a bf16 VMEM scratch with a zero halo of width
    # `dil`.  Only the halo ring is zeroed; the interior is fully rewritten.
    zr = jnp.zeros((dil, Wm, Cout), jnp.bfloat16)
    zc = jnp.zeros((Ho, dil, Cout), jnp.bfloat16)
    mid_ref[0:dil, :, :] = zr
    mid_ref[dil + Ho:Hm, :, :] = zr
    mid_ref[dil:dil + Ho, 0:dil, :] = zc
    mid_ref[dil:dil + Ho, dil + Wo:Wm, :] = zc
    mid_ref[dil:dil + Ho, dil:dil + Wo, :] = mid.reshape(Ho, Wo, Cout)

    # ---- conv2 (BN scale folded into w2): ONE K = 9*Cout MXU dot -----------
    cols2 = jnp.concatenate(
        [mid_ref[i * dil:i * dil + Ho, j * dil:j * dil + Wo, :].reshape(M, Cout)
         for i in range(3) for j in range(3)], axis=-1)            # (M, 9*Cout) bf16
    out = jnp.dot(cols2, w2_ref[...],
                  preferred_element_type=jnp.float32) + b2_ref[...]
    # (b2_ref already includes the downsample-BN bias when has_downsample.)

    # ---- residual shortcut --------------------------------------------------
    centre = x_tap(pad1, pad1).reshape(M, Cin)        # strided "centre" samples of x
    if has_downsample:                                # 1x1 conv, folded BN
        out = out + jnp.dot(centre, wd_ref[...],
                            preferred_element_type=jnp.float32)
    else:                                             # identity (stride==1, Cin==Cout)
        out = out + centre.astype(jnp.float32)

    # NOTE: BasicBlock has no ReLU after the residual add (matches the reference).
    o_ref[...] = out.reshape(Ho, Wo, Cout).astype(o_ref.dtype)


# ---------------------------------------------------------------------------
# JAX-side prep: BN folding, padding, phase decomposition, pallas_call wrapper
# ---------------------------------------------------------------------------
def _fold_bn(bn, eps=1e-5):
    scale = bn["gamma"] / jnp.sqrt(bn["var"] + eps)
    bias = bn["beta"] - bn["mean"] * scale
    return scale, bias


def _prep_conv(p):
    """Fold BN scale into bf16 weights: returns ((KH*KW*Cin, Cout) bf16, (1, Cout) f32)."""
    scale, bias = _fold_bn(p["bn"])
    w = p["w"]                                       # (Cout, Cin, KH, KW) PyTorch layout
    cout, cin, kh, kw = w.shape
    wt = jnp.transpose(w, (2, 3, 1, 0)).reshape(kh * kw * cin, cout)
    wt = (wt * scale[None, :]).astype(jnp.bfloat16)
    return wt, bias.reshape(1, cout).astype(jnp.float32)


def _phase_decompose(xpad, stride):
    """(N, Hp, Wp, C) -> (N, stride*stride, ceil(Hp/s), ceil(Wp/s), C)."""
    N, Hp, Wp, C = xpad.shape
    s = stride
    Hr = -(-Hp // s) * s
    Wr = -(-Wp // s) * s
    xr = jnp.pad(xpad, ((0, 0), (0, Hr - Hp), (0, Wr - Wp), (0, 0)))
    phases = [xr[:, a::s, b::s, :] for a in range(s) for b in range(s)]
    return jnp.stack(phases, axis=1)


def basic_block_forward_nhwc(params, x_nhwc, *, stride, pad, dilation):
    """Fused BasicBlock.forward: NHWC in -> NHWC bf16 out (chaining-friendly)."""
    x = x_nhwc.astype(jnp.bfloat16)
    N, H, W, Cin = x.shape
    Cout = params["conv1"]["w"].shape[0]

    dil = dilation
    P1 = dilation if dilation > 1 else pad           # PyTorch padding rule
    if P1 != dil:
        raise ValueError("BasicBlock residual add requires padding == dilation")
    has_downsample = params["downsample"] is not None
    if not has_downsample and (stride != 1 or Cin != Cout):
        raise ValueError("identity shortcut requires stride == 1 and Cin == Cout")

    Ho = (H + 2 * P1 - 2 * dil - 1) // stride + 1
    Wo = (W + 2 * P1 - 2 * dil - 1) // stride + 1

    xpad = jnp.pad(x, ((0, 0), (P1, P1), (P1, P1), (0, 0)))
    if stride == 1:
        x_in = xpad                                  # no phase decomposition / extra copy
        x_spec = pl.BlockSpec((None, H + 2 * P1, W + 2 * P1, Cin),
                              lambda n: (n, 0, 0, 0))
    else:
        x_in = _phase_decompose(xpad, stride)        # (N, s*s, Hps, Wps, Cin)
        _, ss, Hps, Wps, _ = x_in.shape
        x_spec = pl.BlockSpec((None, ss, Hps, Wps, Cin),
                              lambda n: (n, 0, 0, 0, 0))

    w1t, b1 = _prep_conv(params["conv1"])            # (9*Cin, Cout), (1, Cout)
    w2t, b2 = _prep_conv(params["conv2"])            # (9*Cout, Cout), (1, Cout)
    wdt = None
    if has_downsample:
        wdt, bd = _prep_conv(params["downsample"])   # (Cin, Cout), (1, Cout)
        b2 = b2 + bd                                 # fold both bias adds into one

    args = [x_in, w1t, b1, w2t, b2]
    in_specs = [x_spec] + [pl.BlockSpec(a.shape, lambda n: (0, 0))
                           for a in (w1t, b1, w2t, b2)]
    if has_downsample:
        args.append(wdt)
        in_specs.append(pl.BlockSpec(wdt.shape, lambda n: (0, 0)))

    kernel = functools.partial(
        _basic_block_kernel, Ho=Ho, Wo=Wo, stride=stride, dil=dil, pad1=P1,
        has_downsample=has_downsample)

    return pl.pallas_call(
        kernel,
        out_shape=jax.ShapeDtypeStruct((N, Ho, Wo, Cout), jnp.bfloat16),
        grid=(N,),
        in_specs=in_specs,
        out_specs=pl.BlockSpec((None, Ho, Wo, Cout), lambda n: (n, 0, 0, 0)),
        scratch_shapes=[
            pltpu.VMEM((Ho + 2 * dil, Wo + 2 * dil, Cout), jnp.bfloat16)],
        compiler_params=pltpu.CompilerParams(
            dimension_semantics=("parallel",)),
    )(*args)


def basic_block_forward(params, x_nchw, *, stride, pad, dilation):
    """PyTorch-layout BasicBlock.forward: NCHW in -> NCHW f32 out."""
    x = jnp.transpose(x_nchw, (0, 2, 3, 1))
    y = basic_block_forward_nhwc(params, x, stride=stride, pad=pad, dilation=dilation)
    return jnp.transpose(y, (0, 3, 1, 2)).astype(jnp.float32)


# ---------------------------------------------------------------------------
# Pure-JAX reference (same BN folding) for correctness checking
# ---------------------------------------------------------------------------
def _conv_bn_ref(x, p, stride, padding, dilation):
    scale, bias = _fold_bn(p["bn"])
    w = jnp.transpose(p["w"], (2, 3, 1, 0))          # HWIO
    y = jax.lax.conv_general_dilated(
        x, w, window_strides=(stride, stride),
        padding=[(padding, padding), (padding, padding)],
        rhs_dilation=(dilation, dilation),
        dimension_numbers=("NHWC", "HWIO", "NHWC"),
        precision=jax.lax.Precision.HIGHEST)
    return y * scale[None, None, None, :] + bias[None, None, None, :]


def basic_block_reference_nhwc(params, x_nhwc, *, stride, pad, dilation):
    x = x_nhwc.astype(jnp.float32)
    P1 = dilation if dilation > 1 else pad
    out = jax.nn.relu(_conv_bn_ref(x, params["conv1"], stride, P1, dilation))
    out = _conv_bn_ref(out, params["conv2"], 1, P1, dilation)
    if params["downsample"] is not None:
        sc = _conv_bn_ref(x, params["downsample"], stride, 0, 1)
    else:
        sc = x
    return out + sc


# ---------------------------------------------------------------------------
# Parameter init (deterministic, synthetic)
# ---------------------------------------------------------------------------
def init_basic_block(key, inplanes, planes, *, downsample):
    it = iter(jax.random.split(key, 16))

    def conv_bn(cin, cout, k):
        std = (2.0 / (cin * k * k)) ** 0.5
        return {
            "w": jax.random.normal(next(it), (cout, cin, k, k), jnp.float32) * std,
            "bn": {
                "gamma": 1.0 + 0.1 * jax.random.normal(next(it), (cout,), jnp.float32),
                "beta": 0.1 * jax.random.normal(next(it), (cout,), jnp.float32),
                "mean": 0.1 * jax.random.normal(next(it), (cout,), jnp.float32),
                "var": 1.0 + 0.1 * jnp.abs(
                    jax.random.normal(next(it), (cout,), jnp.float32)),
            },
        }

    return {
        "conv1": conv_bn(inplanes, planes, 3),
        "conv2": conv_bn(planes, planes, 3),
        "downsample": conv_bn(inplanes, planes, 1) if downsample else None,
    }


if __name__ == "__main__":
    key = jax.random.PRNGKey(0)
    k_a, k_b, k_c, k_x = jax.random.split(key, 4)

    # Small shapes consistent with the module: batch=2, 32 channels, 16x16 (NCHW).
    x_nchw = jax.random.normal(k_x, (2, 32, 16, 16), jnp.float32)

    # Block A: stride-2 block with 1x1-conv downsample (32 -> 64 channels).
    pA = init_basic_block(k_a, 32, 64, downsample=True)
    # Block B: stride-1 identity-shortcut block.
    pB = init_basic_block(k_b, 64, 64, downsample=False)
    # Block C: dilation-2 block (padding = dilation), identity shortcut.
    pC = init_basic_block(k_c, 64, 64, downsample=False)

    fwd_a = jax.jit(functools.partial(basic_block_forward_nhwc,
                                      stride=2, pad=1, dilation=1))
    fwd_b = jax.jit(functools.partial(basic_block_forward_nhwc,
                                      stride=1, pad=1, dilation=1))
    fwd_c = jax.jit(functools.partial(basic_block_forward_nhwc,
                                      stride=1, pad=1, dilation=2))

    # One layout change at network entry; activations stay bf16 NHWC across blocks.
    x_nhwc = jnp.transpose(x_nchw, (0, 2, 3, 1)).astype(jnp.bfloat16)
    yA = fwd_a(pA, x_nhwc)
    yB = fwd_b(pB, yA)
    yC = fwd_c(pC, yB)
    jax.block_until_ready((yA, yB, yC))

    assert yA.shape == (2, 8, 8, 64), yA.shape
    assert yB.shape == (2, 8, 8, 64), yB.shape
    assert yC.shape == (2, 8, 8, 64), yC.shape

    # Compare against the XLA reference (bf16 operands/activations).
    rA = basic_block_reference_nhwc(pA, x_nhwc, stride=2, pad=1, dilation=1)
    rB = basic_block_reference_nhwc(pB, yA, stride=1, pad=1, dilation=1)
    rC = basic_block_reference_nhwc(pC, yB, stride=1, pad=1, dilation=2)
    for y, r in ((yA, rA), (yB, rB), (yC, rC)):
        y32 = y.astype(jnp.float32)
        assert bool(jnp.all(jnp.isfinite(y32)))
        err = float(jnp.max(jnp.abs(y32 - r)))
        ref_scale = float(jnp.max(jnp.abs(r)))
        assert err < 0.03 * max(1.0, ref_scale), (err, ref_scale)

    # Module-facing NCHW wrapper (layout round-trip only at the network boundary).
    fwd_a_nchw = jax.jit(functools.partial(basic_block_forward,
                                           stride=2, pad=1, dilation=1))
    yA_nchw = fwd_a_nchw(pA, x_nchw)
    jax.block_until_ready(yA_nchw)
    assert yA_nchw.shape == (2, 64, 8, 8), yA_nchw.shape
    errA = float(jnp.max(jnp.abs(yA_nchw - jnp.transpose(rA, (0, 3, 1, 2)))))
    assert errA < 0.03 * max(1.0, float(jnp.max(jnp.abs(rA)))), errA

    print("KERNEL_OK")
</pallas_src>

<mosaic_0001>
module attributes {stable_mosaic.version = 11 : i64} {
  func.func @_basic_block_kernel(%arg0: i32, %arg1: memref<1x4x9x9x32xbf16, #tpu.memory_space<vmem>>, %arg2: memref<288x64xbf16, #tpu.memory_space<vmem>>, %arg3: memref<1x64xf32, #tpu.memory_space<vmem>>, %arg4: memref<576x64xbf16, #tpu.memory_space<vmem>>, %arg5: memref<1x64xf32, #tpu.memory_space<vmem>>, %arg6: memref<32x64xbf16, #tpu.memory_space<vmem>>, %arg7: memref<1x8x8x64xbf16, #tpu.memory_space<vmem>>, %arg8: memref<10x10x64xbf16, #tpu.memory_space<vmem>>) attributes {dimension_semantics = [#tpu.dimension_semantics<parallel>], iteration_bounds = array<i64: 2>, scalar_prefetch = 0 : i64, scratch_operands = 1 : i64, tpu.core_type = #tpu.core_type<tc>, window_params = [{transform_indices = @transform_0, window_bounds = array<i64: 1, 4, 9, 9, 32>}, {pipeline_mode = #tpu.pipeline_mode<synchronous>, transform_indices = @transform_1, window_bounds = array<i64: 288, 64>}, {pipeline_mode = #tpu.pipeline_mode<synchronous>, transform_indices = @transform_2, window_bounds = array<i64: 1, 64>}, {pipeline_mode = #tpu.pipeline_mode<synchronous>, transform_indices = @transform_3, window_bounds = array<i64: 576, 64>}, {pipeline_mode = #tpu.pipeline_mode<synchronous>, transform_indices = @transform_4, window_bounds = array<i64: 1, 64>}, {pipeline_mode = #tpu.pipeline_mode<synchronous>, transform_indices = @transform_5, window_bounds = array<i64: 32, 64>}, {transform_indices = @transform_6, window_bounds = array<i64: 1, 8, 8, 64>}]} {
    %c0 = arith.constant 0 : index
    %c0_0 = arith.constant 0 : index
    %c0_1 = arith.constant 0 : index
    %c0_2 = arith.constant 0 : index
    %c0_3 = arith.constant 0 : index
    %0 = vector.load %arg1[%c0, %c0_0, %c0_1, %c0_2, %c0_3] : memref<1x4x9x9x32xbf16, #tpu.memory_space<vmem>>, vector<1x1x8x8x32xbf16>
    %1 = vector.shape_cast %0 : vector<1x1x8x8x32xbf16> to vector<8x8x32xbf16>
    %2 = vector.shape_cast %1 : vector<8x8x32xbf16> to vector<64x32xbf16>
    %c0_4 = arith.constant 0 : index
    %c1 = arith.constant 1 : index
    %c0_5 = arith.constant 0 : index
    %c0_6 = arith.constant 0 : index
    %c0_7 = arith.constant 0 : index
    %3 = vector.load %arg1[%c0_4, %c1, %c0_5, %c0_6, %c0_7] : memref<1x4x9x9x32xbf16, #tpu.memory_space<vmem>>, vector<1x1x8x8x32xbf16>
    %4 = vector.shape_cast %3 : vector<1x1x8x8x32xbf16> to vector<8x8x32xbf16>
    %5 = vector.shape_cast %4 : vector<8x8x32xbf16> to vector<64x32xbf16>
    %c0_8 = arith.constant 0 : index
    %c0_9 = arith.constant 0 : index
    %c0_10 = arith.constant 0 : index
    %c1_11 = arith.constant 1 : index
    %c0_12 = arith.constant 0 : index
    %6 = vector.load %arg1[%c0_8, %c0_9, %c0_10, %c1_11, %c0_12] : memref<1x4x9x9x32xbf16, #tpu.memory_space<vmem>>, vector<1x1x8x8x32xbf16>
    %7 = vector.shape_cast %6 : vector<1x1x8x8x32xbf16> to vector<8x8x32xbf16>
    %8 = vector.shape_cast %7 : vector<8x8x32xbf16> to vector<64x32xbf16>
    %c0_13 = arith.constant 0 : index
    %c2 = arith.constant 2 : index
    %c0_14 = arith.constant 0 : index
    %c0_15 = arith.constant 0 : index
    %c0_16 = arith.constant 0 : index
    %9 = vector.load %arg1[%c0_13, %c2, %c0_14, %c0_15, %c0_16] : memref<1x4x9x9x32xbf16, #tpu.memory_space<vmem>>, vector<1x1x8x8x32xbf16>
    %10 = vector.shape_cast %9 : vector<1x1x8x8x32xbf16> to vector<8x8x32xbf16>
    %11 = vector.shape_cast %10 : vector<8x8x32xbf16> to vector<64x32xbf16>
    %c0_17 = arith.constant 0 : index
    %c3 = arith.constant 3 : index
    %c0_18 = arith.constant 0 : index
    %c0_19 = arith.constant 0 : index
    %c0_20 = arith.constant 0 : index
    %12 = vector.load %arg1[%c0_17, %c3, %c0_18, %c0_19, %c0_20] : memref<1x4x9x9x32xbf16, #tpu.memory_space<vmem>>, vector<1x1x8x8x32xbf16>
    %13 = vector.shape_cast %12 : vector<1x1x8x8x32xbf16> to vector<8x8x32xbf16>
    %14 = vector.shape_cast %13 : vector<8x8x32xbf16> to vector<64x32xbf16>
    %c0_21 = arith.constant 0 : index
    %c2_22 = arith.constant 2 : index
    %c0_23 = arith.constant 0 : index
    %c1_24 = arith.constant 1 : index
    %c0_25 = arith.constant 0 : index
    %15 = vector.load %arg1[%c0_21, %c2_22, %c0_23, %c1_24, %c0_25] : memref<1x4x9x9x32xbf16, #tpu.memory_space<vmem>>, vector<1x1x8x8x32xbf16>
    %16 = vector.shape_cast %15 : vector<1x1x8x8x32xbf16> to vector<8x8x32xbf16>
    %17 = vector.shape_cast %16 : vector<8x8x32xbf16> to vector<64x32xbf16>
    %c0_26 = arith.constant 0 : index
    %c0_27 = arith.constant 0 : index
    %c1_28 = arith.constant 1 : index
    %c0_29 = arith.constant 0 : index
    %c0_30 = arith.constant 0 : index
    %18 = vector.load %arg1[%c0_26, %c0_27, %c1_28, %c0_29, %c0_30] : memref<1x4x9x9x32xbf16, #tpu.memory_space<vmem>>, vector<1x1x8x8x32xbf16>
    %19 = vector.shape_cast %18 : vector<1x1x8x8x32xbf16> to vector<8x8x32xbf16>
    %20 = vector.shape_cast %19 : vector<8x8x32xbf16> to vector<64x32xbf16>
    %c0_31 = arith.constant 0 : index
    %c1_32 = arith.constant 1 : index
    %c1_33 = arith.constant 1 : index
    %c0_34 = arith.constant 0 : index
    %c0_35 = arith.constant 0 : index
    %21 = vector.load %arg1[%c0_31, %c1_32, %c1_33, %c0_34, %c0_35] : memref<1x4x9x9x32xbf16, #tpu.memory_space<vmem>>, vector<1x1x8x8x32xbf16>
    %22 = vector.shape_cast %21 : vector<1x1x8x8x32xbf16> to vector<8x8x32xbf16>
    %23 = vector.shape_cast %22 : vector<8x8x32xbf16> to vector<64x32xbf16>
    %c0_36 = arith.constant 0 : index
    %c0_37 = arith.constant 0 : index
    %c1_38 = arith.constant 1 : index
    %c1_39 = arith.constant 1 : index
    %c0_40 = arith.constant 0 : index
    %24 = vector.load %arg1[%c0_36, %c0_37, %c1_38, %c1_39, %c0_40] : memref<1x4x9x9x32xbf16, #tpu.memory_space<vmem>>, vector<1x1x8x8x32xbf16>
    %25 = vector.shape_cast %24 : vector<1x1x8x8x32xbf16> to vector<8x8x32xbf16>
    %26 = vector.shape_cast %25 : vector<8x8x32xbf16> to vector<64x32xbf16>
    %27 = tpu.concatenate %2, %5, %8, %11, %14, %17, %20, %23, %26 in 1 : vector<64x32xbf16>, vector<64x32xbf16>, vector<64x32xbf16>, vector<64x32xbf16>, vector<64x32xbf16>, vector<64x32xbf16>, vector<64x32xbf16>, vector<64x32xbf16>, vector<64x32xbf16> -> vector<64x288xbf16>
    %c0_41 = arith.constant 0 : index
    %c0_42 = arith.constant 0 : index
    %28 = vector.load %arg2[%c0_41, %c0_42] : memref<288x64xbf16, #tpu.memory_space<vmem>>, vector<288x64xbf16>
    %cst = arith.constant dense<0.000000e+00> : vector<64x64xf32>
    %29 = tpu.matmul %27, %28, %cst {dimension_numbers = #tpu.dot_dimension_numbers<[1], [0], [0], [1], [0, 0, 1, 1], [], []>} : vector<64x288xbf16>, vector<288x64xbf16>, vector<64x64xf32> -> vector<64x64xf32>
    %c0_43 = arith.constant 0 : index
    %c0_44 = arith.constant 0 : index
    %30 = vector.load %arg3[%c0_43, %c0_44] : memref<1x64xf32, #tpu.memory_space<vmem>>, vector<1x64xf32>
    %31 = vector.broadcast %30 : vector<1x64xf32> to vector<64x64xf32>
    %32 = arith.addf %29, %31 : vector<64x64xf32>
    %cst_45 = arith.constant 0.000000e+00 : f32
    %33 = vector.broadcast %cst_45 : f32 to vector<64x64xf32>
    %34 = arith.maximumf %32, %33 : vector<64x64xf32>
    %35 = arith.truncf %34 : vector<64x64xf32> to vector<64x64xbf16>
    %cst_46 = arith.constant 0.000000e+00 : bf16
    %36 = vector.broadcast %cst_46 : bf16 to vector<1x10x64xbf16>
    %cst_47 = arith.constant 0.000000e+00 : bf16
    %37 = vector.broadcast %cst_47 : bf16 to vector<8x1x64xbf16>
    %c0_48 = arith.constant 0 : index
    %c0_49 = arith.constant 0 : index
    %c0_50 = arith.constant 0 : index
    %38 = vector.load %arg8[%c0_48, %c0_49, %c0_50] : memref<10x10x64xbf16, #tpu.memory_space<vmem>>, vector<1x10x64xbf16>
    tpu.vector_store %arg8[%c0_48, %c0_49, %c0_50], %36 {strides = array<i32>} : memref<10x10x64xbf16, #tpu.memory_space<vmem>>, vector<1x10x64xbf16>,
    %c9 = arith.constant 9 : index
    %c0_51 = arith.constant 0 : index
    %c0_52 = arith.constant 0 : index
    %39 = vector.load %arg8[%c9, %c0_51, %c0_52] : memref<10x10x64xbf16, #tpu.memory_space<vmem>>, vector<1x10x64xbf16>
    tpu.vector_store %arg8[%c9, %c0_51, %c0_52], %36 {strides = array<i32>} : memref<10x10x64xbf16, #tpu.memory_space<vmem>>, vector<1x10x64xbf16>,
    %c1_53 = arith.constant 1 : index
    %c0_54 = arith.constant 0 : index
    %c0_55 = arith.constant 0 : index
    %40 = vector.load %arg8[%c1_53, %c0_54, %c0_55] : memref<10x10x64xbf16, #tpu.memory_space<vmem>>, vector<8x1x64xbf16>
    tpu.vector_store %arg8[%c1_53, %c0_54, %c0_55], %37 {strides = array<i32>} : memref<10x10x64xbf16, #tpu.memory_space<vmem>>, vector<8x1x64xbf16>,
    %c1_56 = arith.constant 1 : index
    %c9_57 = arith.constant 9 : index
    %c0_58 = arith.constant 0 : index
    %41 = vector.load %arg8[%c1_56, %c9_57, %c0_58] : memref<10x10x64xbf16, #tpu.memory_space<vmem>>, vector<8x1x64xbf16>
    tpu.vector_store %arg8[%c1_56, %c9_57, %c0_58], %37 {strides = array<i32>} : memref<10x10x64xbf16, #tpu.memory_space<vmem>>, vector<8x1x64xbf16>,
    %42 = vector.shape_cast %35 : vector<64x64xbf16> to vector<8x8x64xbf16>
    %c1_59 = arith.constant 1 : index
    %c1_60 = arith.constant 1 : index
    %c0_61 = arith.constant 0 : index
    %43 = vector.load %arg8[%c1_59, %c1_60, %c0_61] : memref<10x10x64xbf16, #tpu.memory_space<vmem>>, vector<8x8x64xbf16>
    tpu.vector_store %arg8[%c1_59, %c1_60, %c0_61], %42 {strides = array<i32>} : memref<10x10x64xbf16, #tpu.memory_space<vmem>>, vector<8x8x64xbf16>,
    %c0_62 = arith.constant 0 : index
    %c0_63 = arith.constant 0 : index
    %c0_64 = arith.constant 0 : index
    %44 = vector.load %arg8[%c0_62, %c0_63, %c0_64] : memref<10x10x64xbf16, #tpu.memory_space<vmem>>, vector<8x8x64xbf16>
    %45 = vector.shape_cast %44 : vector<8x8x64xbf16> to vector<64x64xbf16>
    %c0_65 = arith.constant 0 : index
    %c1_66 = arith.constant 1 : index
    %c0_67 = arith.constant 0 : index
    %46 = vector.load %arg8[%c0_65, %c1_66, %c0_67] : memref<10x10x64xbf16, #tpu.memory_space<vmem>>, vector<8x8x64xbf16>
    %47 = vector.shape_cast %46 : vector<8x8x64xbf16> to vector<64x64xbf16>
    %c0_68 = arith.constant 0 : index
    %c2_69 = arith.constant 2 : index
    %c0_70 = arith.constant 0 : index
    %48 = vector.load %arg8[%c0_68, %c2_69, %c0_70] : memref<10x10x64xbf16, #tpu.memory_space<vmem>>, vector<8x8x64xbf16>
    %49 = vector.shape_cast %48 : vector<8x8x64xbf16> to vector<64x64xbf16>
    %c1_71 = arith.constant 1 : index
    %c0_72 = arith.constant 0 : index
    %c0_73 = arith.constant 0 : index
    %50 = vector.load %arg8[%c1_71, %c0_72, %c0_73] : memref<10x10x64xbf16, #tpu.memory_space<vmem>>, vector<8x8x64xbf16>
    %51 = vector.shape_cast %50 : vector<8x8x64xbf16> to vector<64x64xbf16>
    %c1_74 = arith.constant 1 : index
    %c1_75 = arith.constant 1 : index
    %c0_76 = arith.constant 0 : index
    %52 = vector.load %arg8[%c1_74, %c1_75, %c0_76] : memref<10x10x64xbf16, #tpu.memory_space<vmem>>, vector<8x8x64xbf16>
    %53 = vector.shape_cast %52 : vector<8x8x64xbf16> to vector<64x64xbf16>
    %c1_77 = arith.constant 1 : index
    %c2_78 = arith.constant 2 : index
    %c0_79 = arith.constant 0 : index
    %54 = vector.load %arg8[%c1_77, %c2_78, %c0_79] : memref<10x10x64xbf16, #tpu.memory_space<vmem>>, vector<8x8x64xbf16>
    %55 = vector.shape_cast %54 : vector<8x8x64xbf16> to vector<64x64xbf16>
    %c2_80 = arith.constant 2 : index
    %c0_81 = arith.constant 0 : index
    %c0_82 = arith.constant 0 : index
    %56 = vector.load %arg8[%c2_80, %c0_81, %c0_82] : memref<10x10x64xbf16, #tpu.memory_space<vmem>>, vector<8x8x64xbf16>
    %57 = vector.shape_cast %56 : vector<8x8x64xbf16> to vector<64x64xbf16>
    %c2_83 = arith.constant 2 : index
    %c1_84 = arith.constant 1 : index
    %c0_85 = arith.constant 0 : index
    %58 = vector.load %arg8[%c2_83, %c1_84, %c0_85] : memref<10x10x64xbf16, #tpu.memory_space<vmem>>, vector<8x8x64xbf16>
    %59 = vector.shape_cast %58 : vector<8x8x64xbf16> to vector<64x64xbf16>
    %c2_86 = arith.constant 2 : index
    %c2_87 = arith.constant 2 : index
    %c0_88 = arith.constant 0 : index
    %60 = vector.load %arg8[%c2_86, %c2_87, %c0_88] : memref<10x10x64xbf16, #tpu.memory_space<vmem>>, vector<8x8x64xbf16>
    %61 = vector.shape_cast %60 : vector<8x8x64xbf16> to vector<64x64xbf16>
    %62 = tpu.concatenate %45, %47, %49, %51, %53, %55, %57, %59, %61 in 1 : vector<64x64xbf16>, vector<64x64xbf16>, vector<64x64xbf16>, vector<64x64xbf16>, vector<64x64xbf16>, vector<64x64xbf16>, vector<64x64xbf16>, vector<64x64xbf16>, vector<64x64xbf16> -> vector<64x576xbf16>
    %c0_89 = arith.constant 0 : index
    %c0_90 = arith.constant 0 : index
    %63 = vector.load %arg4[%c0_89, %c0_90] : memref<576x64xbf16, #tpu.memory_space<vmem>>, vector<576x64xbf16>
    %cst_91 = arith.constant dense<0.000000e+00> : vector<64x64xf32>
    %64 = tpu.matmul %62, %63, %cst_91 {dimension_numbers = #tpu.dot_dimension_numbers<[1], [0], [0], [1], [0, 0, 1, 1], [], []>} : vector<64x576xbf16>, vector<576x64xbf16>, vector<64x64xf32> -> vector<64x64xf32>
    %c0_92 = arith.constant 0 : index
    %c0_93 = arith.constant 0 : index
    %65 = vector.load %arg5[%c0_92, %c0_93] : memref<1x64xf32, #tpu.memory_space<vmem>>, vector<1x64xf32>
    %66 = vector.broadcast %65 : vector<1x64xf32> to vector<64x64xf32>
    %67 = arith.addf %64, %66 : vector<64x64xf32>
    %c0_94 = arith.constant 0 : index
    %c3_95 = arith.constant 3 : index
    %c0_96 = arith.constant 0 : index
    %c0_97 = arith.constant 0 : index
    %c0_98 = arith.constant 0 : index
    %68 = vector.load %arg1[%c0_94, %c3_95, %c0_96, %c0_97, %c0_98] : memref<1x4x9x9x32xbf16, #tpu.memory_space<vmem>>, vector<1x1x8x8x32xbf16>
    %69 = vector.shape_cast %68 : vector<1x1x8x8x32xbf16> to vector<8x8x32xbf16>
    %70 = vector.shape_cast %69 : vector<8x8x32xbf16> to vector<64x32xbf16>
    %c0_99 = arith.constant 0 : index
    %c0_100 = arith.constant 0 : index
    %71 = vector.load %arg6[%c0_99, %c0_100] : memref<32x64xbf16, #tpu.memory_space<vmem>>, vector<32x64xbf16>
    %cst_101 = arith.constant dense<0.000000e+00> : vector<64x64xf32>
    %72 = tpu.matmul %70, %71, %cst_101 {dimension_numbers = #tpu.dot_dimension_numbers<[1], [0], [0], [1], [0, 0, 1, 1], [], []>} : vector<64x32xbf16>, vector<32x64xbf16>, vector<64x64xf32> -> vector<64x64xf32>
    %73 = arith.addf %67, %72 : vector<64x64xf32>
    %74 = vector.shape_cast %73 : vector<64x64xf32> to vector<8x8x64xf32>
    %75 = arith.truncf %74 : vector<8x8x64xf32> to vector<8x8x64xbf16>
    %c0_102 = arith.constant 0 : index
    %c0_103 = arith.constant 0 : index
    %c0_104 = arith.constant 0 : index
    %c0_105 = arith.constant 0 : index
    %76 = vector.load %arg7[%c0_102, %c0_103, %c0_104, %c0_105] : memref<1x8x8x64xbf16, #tpu.memory_space<vmem>>, vector<1x8x8x64xbf16>
    %77 = vector.shape_cast %76 : vector<1x8x8x64xbf16> to vector<8x8x64xbf16>
    %78 = vector.shape_cast %75 : vector<8x8x64xbf16> to vector<1x8x8x64xbf16>
    tpu.vector_store %arg7[%c0_102, %c0_103, %c0_104, %c0_105], %78 {strides = array<i32>} : memref<1x8x8x64xbf16, #tpu.memory_space<vmem>>, vector<1x8x8x64xbf16>,
    return
  }
  func.func @transform_0(%arg0: i32) -> (i32, i32, i32, i32, i32) {
    %c0_i32 = arith.constant 0 : i32
    %c0_i32_0 = arith.constant 0 : i32
    %c0_i32_1 = arith.constant 0 : i32
    %c0_i32_2 = arith.constant 0 : i32
    %c0_i32_3 = arith.constant 0 : i32
    return %arg0, %c0_i32, %c0_i32_0, %c0_i32_1, %c0_i32_2 : i32, i32, i32, i32, i32
  }
  func.func @transform_1(%arg0: i32) -> (i32, i32) {
    %c0_i32 = arith.constant 0 : i32
    %c0_i32_0 = arith.constant 0 : i32
    %c0_i32_1 = arith.constant 0 : i32
    return %c0_i32, %c0_i32_0 : i32, i32
  }
  func.func @transform_2(%arg0: i32) -> (i32, i32) {
    %c0_i32 = arith.constant 0 : i32
    %c0_i32_0 = arith.constant 0 : i32
    %c0_i32_1 = arith.constant 0 : i32
    return %c0_i32, %c0_i32_0 : i32, i32
  }
  func.func @transform_3(%arg0: i32) -> (i32, i32) {
    %c0_i32 = arith.constant 0 : i32
    %c0_i32_0 = arith.constant 0 : i32
    %c0_i32_1 = arith.constant 0 : i32
    return %c0_i32, %c0_i32_0 : i32, i32
  }
  func.func @transform_4(%arg0: i32) -> (i32, i32) {
    %c0_i32 = arith.constant 0 : i32
    %c0_i32_0 = arith.constant 0 : i32
    %c0_i32_1 = arith.constant 0 : i32
    return %c0_i32, %c0_i32_0 : i32, i32
  }
  func.func @transform_5(%arg0: i32) -> (i32, i32) {
    %c0_i32 = arith.constant 0 : i32
    %c0_i32_0 = arith.constant 0 : i32
    %c0_i32_1 = arith.constant 0 : i32
    return %c0_i32, %c0_i32_0 : i32, i32
  }
  func.func @transform_6(%arg0: i32) -> (i32, i32, i32, i32) {
    %c0_i32 = arith.constant 0 : i32
    %c0_i32_0 = arith.constant 0 : i32
    %c0_i32_1 = arith.constant 0 : i32
    %c0_i32_2 = arith.constant 0 : i32
    return %arg0, %c0_i32, %c0_i32_0, %c0_i32_1 : i32, i32, i32, i32
  }
}

</mosaic_0001>

<llo_original>
// kernel: basic_block_forward_nhwc.1
$region0: #{basic_block_forward_nhwc.1}
  #allocation0 [shape = 'u32[]', space=smem, size = 0x4, offset = 0x4, fixed_abs, tag = 'smem constant byte address 0x4 - core index']
  #allocation1 [shape = 'u32[144,128]{1,0:T(1,128)}', space=vmem, size = 0x12000, scoped, tag = 'internal scratch']
  #allocation2 [shape = 'bf16[10,10,64]{2,1,0:T(8,128)(2,1)}', space=vmem, size = 0xa000, scoped, tag = 'scratch operand']
  %s0 = inlined_call_operand.vmem [shape: bf16[2,4,9,9,32], index: 0, kind: input, shape index: {}]
  %s1 = inlined_call_operand.vmem [shape: bf16[288,64], index: 1, kind: input, shape index: {}]
  %s2 = inlined_call_operand.vmem [shape: f32[1,64], index: 2, kind: input, shape index: {}]
  %s3 = inlined_call_operand.vmem [shape: bf16[576,64], index: 3, kind: input, shape index: {}]
  %s4 = inlined_call_operand.vmem [shape: f32[1,64], index: 4, kind: input, shape index: {}]
  %s5 = inlined_call_operand.vmem [shape: bf16[32,64], index: 5, kind: input, shape index: {}]
  %s6 = inlined_call_operand.hbm [shape: bf16[2,8,8,64], index: 6, kind: output, shape index: {}]
  %s7 = sld [smem:[#allocation0]]
  $region57: #{basic_block_forward_nhwc.1} parent=0
    _
  %s9 = ssub.s32 1, %s7
  %s10 = scalar_select 0, %s9, %s7
  $region1: #{basic_block_forward_nhwc.1} parent=0
    #allocation3 [shape = 'u8[32768]{0}', space=vmem, size = 0x8000, scoped, tag = 'output window, operand 0']
    #allocation4 [shape = 's32[2]{0}', space=sflag, size = 0x8, scoped, tag = 'scoped memory for basic_block_forward_nhwc.1']
    %11 = vsyncpa [#allocation4], 0
    %s12 = scalar_lea.sflag [#allocation4], 1
    %13 = vsyncpa %s12, 0
    loop: start=0, step=1, limit=4
    $region2: #{basic_block_forward_nhwc.1} parent=1 // loop_pre_header
      _
    $region3: #{basic_block_forward_nhwc.1} parent=1 // loop_header
      %s15 = sphi 0, %s19
      %p16 = scmp.ge.s32.totalorder %s15, 4
      %s25 = sphi 0, %s27
      %s28 = sphi 0, %s25
      %s29 = sphi 0, %s28
      %s45 = sphi 0, %s29
      %s49 = sphi 0, %s49
      %s51 = sphi 0, %s49
      %s52 = sphi 0, %s51
      %s66 = sphi 0, %s52
      %s70 = sphi 0, %s70
      %s72 = sphi 0, %s70
      %s73 = sphi 0, %s72
      %s87 = sphi 0, %s73
      %s91 = sphi 0, %s91
      %s93 = sphi 0, %s91
      %s94 = sphi 0, %s93
      %s108 = sphi 0, %s94
      %s112 = sphi 0, %s112
      %s114 = sphi 0, %s112
      %s115 = sphi 0, %s114
      %s129 = sphi 0, %s115
      %s133 = sphi 0, %s133
      %s135 = sphi 0, %s133
      %s136 = sphi 0, %s135
      %s150 = sphi 0, %s136
      %s156 = sphi 0, %s158
      %s159 = sphi 0, %s156
      %s160 = sphi 0, %s159
      %s176 = sphi 0, %s160
    $region4: #{basic_block_forward_nhwc.1} parent=1 // loop_header_branch
      %18 = sbr.rel (%p16) target = $region8
    $region5: #{basic_block_forward_nhwc.1} parent=1 // loop_body
      %s20 = ssub.s32 %s15, 1
      %s21 = ssub.s32 %s15, 2
      %s22 = sadd.s32 %s15, 1
      %s23 = ssub.s32 %s15, %s22
      %p24 = scmp.eq.s32.totalorder %s23, 0
      %s26 = sadd.s32 %s25, 1
      %s27 = scalar_select %p24, %s25, %s26
      %p30 = pneg %p24
      %p31 = scmp.eq.s32.totalorder %s15, 1
      %p32 = por %p30, %p31
      %p33 = scmp.ne.s32.totalorder %s25, %s28
      %p34 = scmp.eq.s32.totalorder %s15, 0
      %p35 = por %p33, %p34
      %p36 = scmp.ne.s32.totalorder %s25, %s28
      %p37 = scmp.eq.s32.totalorder %s20, 1
      %p38 = por %p36, %p37
      %p39 = scmp.ne.s32.totalorder %s28, %s29
      %p40 = scmp.eq.s32.totalorder %s20, 0
      %p41 = por %p39, %p40
      %p42 = scmp.ne.s32.totalorder %s28, %s29
      %p43 = scmp.eq.s32.totalorder %s21, 1
      %p44 = por %p42, %p43
      %p46 = scmp.ne.s32.totalorder %s29, %s45
      %p47 = scmp.eq.s32.totalorder %s21, 0
      %p48 = por %p46, %p47
      %s50 = sadd.s32 %s49, 1
      %p53 = scmp.eq.s32.totalorder %s15, 1
      %p54 = scmp.ne.s32.totalorder %s49, %s51
      %p55 = scmp.eq.s32.totalorder %s15, 0
      %p56 = por %p54, %p55
      %p57 = scmp.ne.s32.totalorder %s49, %s51
      %p58 = scmp.eq.s32.totalorder %s20, 1
      %p59 = por %p57, %p58
      %p60 = scmp.ne.s32.totalorder %s51, %s52
      %p61 = scmp.eq.s32.totalorder %s20, 0
      %p62 = por %p60, %p61
      %p63 = scmp.ne.s32.totalorder %s51, %s52
      %p64 = scmp.eq.s32.totalorder %s21, 1
      %p65 = por %p63, %p64
      %p67 = scmp.ne.s32.totalorder %s52, %s66
      %p68 = scmp.eq.s32.totalorder %s21, 0
      %p69 = por %p67, %p68
      %s71 = sadd.s32 %s70, 1
      %p74 = scmp.eq.s32.totalorder %s15, 1
      %p75 = scmp.ne.s32.totalorder %s70, %s72
      %p76 = scmp.eq.s32.totalorder %s15, 0
      %p77 = por %p75, %p76
      %p78 = scmp.ne.s32.totalorder %s70, %s72
      %p79 = scmp.eq.s32.totalorder %s20, 1
      %p80 = por %p78, %p79
      %p81 = scmp.ne.s32.totalorder %s72, %s73
      %p82 = scmp.eq.s32.totalorder %s20, 0
      %p83 = por %p81, %p82
      %p84 = scmp.ne.s32.totalorder %s72, %s73
      %p85 = scmp.eq.s32.totalorder %s21, 1
      %p86 = por %p84, %p85
      %p88 = scmp.ne.s32.totalorder %s73, %s87
      %p89 = scmp.eq.s32.totalorder %s21, 0
      %p90 = por %p88, %p89
      %s92 = sadd.s32 %s91, 1
      %p95 = scmp.eq.s32.totalorder %s15, 1
      %p96 = scmp.ne.s32.totalorder %s91, %s93
      %p97 = scmp.eq.s32.totalorder %s15, 0
      %p98 = por %p96, %p97
      %p99 = scmp.ne.s32.totalorder %s91, %s93
      %p100 = scmp.eq.s32.totalorder %s20, 1
      %p101 = por %p99, %p100
      %p102 = scmp.ne.s32.totalorder %s93, %s94
      %p103 = scmp.eq.s32.totalorder %s20, 0
      %p104 = por %p102, %p103
      %p105 = scmp.ne.s32.totalorder %s93, %s94
      %p106 = scmp.eq.s32.totalorder %s21, 1
      %p107 = por %p105, %p106
      %p109 = scmp.ne.s32.totalorder %s94, %s108
      %p110 = scmp.eq.s32.totalorder %s21, 0
      %p111 = por %p109, %p110
      %s113 = sadd.s32 %s112, 1
      %p116 = scmp.eq.s32.totalorder %s15, 1
      %p117 = scmp.ne.s32.totalorder %s112, %s114
      %p118 = scmp.eq.s32.totalorder %s15, 0
      %p119 = por %p117, %p118
      %p120 = scmp.ne.s32.totalorder %s112, %s114
      %p121 = scmp.eq.s32.totalorder %s20, 1
      %p122 = por %p120, %p121
      %p123 = scmp.ne.s32.totalorder %s114, %s115
      %p124 = scmp.eq.s32.totalorder %s20, 0
      %p125 = por %p123, %p124
      %p126 = scmp.ne.s32.totalorder %s114, %s115
      %p127 = scmp.eq.s32.totalorder %s21, 1
      %p128 = por %p126, %p127
      %p130 = scmp.ne.s32.totalorder %s115, %s129
      %p131 = scmp.eq.s32.totalorder %s21, 0
      %p132 = por %p130, %p131
      %s134 = sadd.s32 %s133, 1
      %p137 = scmp.eq.s32.totalorder %s15, 1
      %p138 = scmp.ne.s32.totalorder %s133, %s135
      %p139 = scmp.eq.s32.totalorder %s15, 0
      %p140 = por %p138, %p139
      %p141 = scmp.ne.s32.totalorder %s133, %s135
      %p142 = scmp.eq.s32.totalorder %s20, 1
      %p143 = por %p141, %p142
      %p144 = scmp.ne.s32.totalorder %s135, %s136
      %p145 = scmp.eq.s32.totalorder %s20, 0
      %p146 = por %p144, %p145
      %p147 = scmp.ne.s32.totalorder %s135, %s136
      %p148 = scmp.eq.s32.totalorder %s21, 1
      %p149 = por %p147, %p148
      %p151 = scmp.ne.s32.totalorder %s136, %s150
      %p152 = scmp.eq.s32.totalorder %s21, 0
      %p153 = por %p151, %p152
      %s154 = ssub.s32 %s15, %s22
      %p155 = scmp.eq.s32.totalorder %s154, 0
      %s157 = sadd.s32 %s156, 1
      %s158 = scalar_select %p155, %s156, %s157
      %p161 = pneg %p155
      %p162 = scmp.eq.s32.totalorder %s15, 1
      %p163 = por %p161, %p162
      %p164 = scmp.ne.s32.totalorder %s156, %s159
      %p165 = scmp.eq.s32.totalorder %s15, 0
      %p166 = por %p164, %p165
      %p167 = scmp.ne.s32.totalorder %s156, %s159
      %p168 = scmp.eq.s32.totalorder %s20, 1
      %p169 = por %p167, %p168
      %p170 = scmp.ne.s32.totalorder %s159, %s160
      %p171 = scmp.eq.s32.totalorder %s20, 0
      %p172 = por %p170, %p171
      %p173 = scmp.ne.s32.totalorder %s159, %s160
      %p174 = scmp.eq.s32.totalorder %s21, 1
      %p175 = por %p173, %p174
      %p177 = scmp.ne.s32.totalorder %s160, %s176
      %p178 = scmp.eq.s32.totalorder %s21, 0
      %p179 = por %p177, %p178
      %p180 = scmp.le.s32.totalorder 1, %s15
      %p181 = scmp.lt.s32.totalorder %s15, 3
      %p182 = pnand %p180, %p181
      %p183 = pneg %p182
      // Predicated region
      $region9: #{basic_block_forward_nhwc.1} parent=5 // pred_check
        _
      $region10: #{basic_block_forward_nhwc.1} parent=5 // pred_check_branch
        %185 = sbr.rel (%p182) target = $region12
      $region11: #{basic_block_forward_nhwc.1} parent=5 // pred_region
        %s186 = ssub.s32 %s15, 1
        // Predicated region
        $region13: #{basic_block_forward_nhwc.1} parent=11 // pred_check
          %p187 = pneg %p62
        $region14: #{basic_block_forward_nhwc.1} parent=11 // pred_check_branch
          %189 = sbr.rel (%p187) target = $region16
        $region15: #{basic_block_forward_nhwc.1} parent=11 // pred_region
          _
        $region16: #{basic_block_forward_nhwc.1} parent=11 // pred_fallthru
          _
        // Predicated region
        $region17: #{basic_block_forward_nhwc.1} parent=11 // pred_check
          %p190 = pneg %p83
        $region18: #{basic_block_forward_nhwc.1} parent=11 // pred_check_branch
          %192 = sbr.rel (%p190) target = $region20
        $region19: #{basic_block_forward_nhwc.1} parent=11 // pred_region
          _
        $region20: #{basic_block_forward_nhwc.1} parent=11 // pred_fallthru
          _
        // Predicated region
        $region21: #{basic_block_forward_nhwc.1} parent=11 // pred_check
          %p193 = pneg %p104
        $region22: #{basic_block_forward_nhwc.1} parent=11 // pred_check_branch
          %195 = sbr.rel (%p193) target = $region24
        $region23: #{basic_block_forward_nhwc.1} parent=11 // pred_region
          _
        $region24: #{basic_block_forward_nhwc.1} parent=11 // pred_fallthru
          _
        // Predicated region
        $region25: #{basic_block_forward_nhwc.1} parent=11 // pred_check
          %p196 = pneg %p125
        $region26: #{basic_block_forward_nhwc.1} parent=11 // pred_check_branch
          %198 = sbr.rel (%p196) target = $region28
        $region27: #{basic_block_forward_nhwc.1} parent=11 // pred_region
          _
        $region28: #{basic_block_forward_nhwc.1} parent=11 // pred_fallthru
          _
        // Predicated region
        $region29: #{basic_block_forward_nhwc.1} parent=11 // pred_check
          %p199 = pneg %p146
        $region30: #{basic_block_forward_nhwc.1} parent=11 // pred_check_branch
          %201 = sbr.rel (%p199) target = $region32
        $region31: #{basic_block_forward_nhwc.1} parent=11 // pred_region
          _
        $region32: #{basic_block_forward_nhwc.1} parent=11 // pred_fallthru
          _
      $region12: #{basic_block_forward_nhwc.1} parent=5 // pred_fallthru
        _
      %p202 = scmp.lt.s32.totalorder %s15, 2
      // Predicated region
      $region33: #{basic_block_forward_nhwc.1} parent=5 // pred_check
        %p203 = pneg %p202
      $region34: #{basic_block_forward_nhwc.1} parent=5 // pred_check_branch
        %205 = sbr.rel (%p203) target = $region36
      $region35: #{basic_block_forward_nhwc.1} parent=5 // pred_region
        // Predicated region
        $region37: #{basic_block_forward_nhwc.1} parent=35 // pred_check
          %p206 = pneg %p35
        $region38: #{basic_block_forward_nhwc.1} parent=35 // pred_check_branch
          %208 = sbr.rel (%p206) target = $region40
        $region39: #{basic_block_forward_nhwc.1} parent=35 // pred_region
          %p209 = scmp.lt.s32.totalorder %s15, 1
          %s210 = scalar_select %p209, %s15, 1
          %s211 = smul.addr %s210, 72
          %s212 = smul.addr %s211, 4
          %s213 = scalar_lea.vmem %s0, %s212
        $region40: #{basic_block_forward_nhwc.1} parent=35 // pred_fallthru
          _
      $region36: #{basic_block_forward_nhwc.1} parent=5 // pred_fallthru
        _
      %p214 = scmp.le.s32.totalorder 1, %s15
      %p215 = scmp.lt.s32.totalorder %s15, 3
      %p216 = pnand %p214, %p215
      %p217 = pneg %p216
      // Predicated region
      $region41: #{basic_block_forward_nhwc.1} parent=5 // pred_check
        _
      $region42: #{basic_block_forward_nhwc.1} parent=5 // pred_check_branch
        %219 = sbr.rel (%p216) target = $region44
      $region43: #{basic_block_forward_nhwc.1} parent=5 // pred_region
        %s220 = ssub.s32 %s15, 1
        %p221 = scmp.lt.s32.totalorder %s20, 1
        %s222 = scalar_select %p221, %s20, 1
        %s223 = smul.addr %s222, 72
        %s224 = smul.addr %s223, 4
        %s225 = scalar_lea.vmem %s0, %s224
        %p226 = pneg %p41
        %p227 = pneg %p38
        %p228 = pneg %p62
        %p229 = pneg %p59
        %p230 = pneg %p83
        %p231 = pneg %p80
        %p232 = pneg %p104
        %p233 = pneg %p101
        %p234 = pneg %p125
        %p235 = pneg %p122
        %p236 = pneg %p146
        %p237 = pneg %p143
        %p238 = pneg %p172
        %p239 = pneg %p169
        %s240 = sand.u32 %s159, 1
        %s241 = scalar_lea.sflag [#allocation4], %s240
        %s242 = sand.u32 %s159, 1
        %s243 = smul.addr %s242, 32
        %s244 = scalar_lea.vmem [#allocation3], %s243
        %p245 = scmp.lt.s32.totalorder %s20, 1
        %s246 = scalar_select %p245, %s20, 1
        %s247 = smul.addr %s246, 72
        %s248 = smul.addr %s247, 4
        %s249 = scalar_lea.vmem %s0, %s248
        %v251 = vld [vmem:[%s249] sm:$0xf]
        %v252 = vld [vmem:[%s249 + $0x8] sm:$0xf]
        %v253 = vld [vmem:[%s249 + $0x10] sm:$0xf]
        %v254 = vld [vmem:[%s249 + $0x18] sm:$0xf]
        %v255 = vld [vmem:[%s249 + $0x20] sm:$0xf]
        %v256 = vld [vmem:[%s249 + $0x28] sm:$0xf]
        %v257 = vld [vmem:[%s249 + $0x30] sm:$0xf]
        %v258 = vld [vmem:[%s249 + $0x38] sm:$0xf]
        %s259 = scalar_lea.vmem %s249, 72
        %v260 = vld [vmem:[%s259] sm:$0xf]
        %v261 = vld [vmem:[%s259 + $0x8] sm:$0xf]
        %v262 = vld [vmem:[%s259 + $0x10] sm:$0xf]
        %v263 = vld [vmem:[%s259 + $0x18] sm:$0xf]
        %v264 = vld [vmem:[%s259 + $0x20] sm:$0xf]
        %v265 = vld [vmem:[%s259 + $0x28] sm:$0xf]
        %v266 = vld [vmem:[%s259 + $0x30] sm:$0xf]
        %v267 = vld [vmem:[%s259 + $0x38] sm:$0xf]
        %v268 = vld [vmem:[%s249 + $0x4] sm:$0x1]
        %v269 = vld [vmem:[%s249 + $0xc] sm:$0x1]
        %v270 = vld [vmem:[%s249 + $0x14] sm:$0x1]
        %v271 = vld [vmem:[%s249 + $0x1c] sm:$0x1]
        %v272 = vld [vmem:[%s249 + $0x24] sm:$0x1]
        %v273 = vld [vmem:[%s249 + $0x2c] sm:$0x1]
        %v274 = vld [vmem:[%s249 + $0x34] sm:$0x1]
        %v275 = vld [vmem:[%s249 + $0x3c] sm:$0x1]
        %vm276 = vsmask.f32 3328
        %vm277 = vsmask.f32 7440
        %vm278 = vmor %vm276, %vm277
        %v280 = vshrl.u32 %v251, 16
        %v282 = vrot.slane %v280, 4
        %v283 = vshll.u32 %v251, 16
        %v285 = vrot.slane %v283, 5
        %v286 = vor.u32 %v282, %v285
        %v287 = vrot.slane %v286, 4
        %v289 = vshll.u32 %v268, 16
        %v291 = vrot.slane %v289, 5
        %v292 = vsel %vm278, %v287, %v291
        %v294 = vshrl.u32 %v252, 16
        %v296 = vrot.slane %v294, 4
        %v297 = vshll.u32 %v252, 16
        %v299 = vrot.slane %v297, 5
        %v300 = vor.u32 %v296, %v299
        %v301 = vrot.slane %v300, 4
        %v303 = vshll.u32 %v269, 16
        %v305 = vrot.slane %v303, 5
        %v306 = vsel %vm278, %v301, %v305
        %v308 = vshrl.u32 %v253, 16
        %v310 = vrot.slane %v308, 4
        %v311 = vshll.u32 %v253, 16
        %v313 = vrot.slane %v311, 5
        %v314 = vor.u32 %v310, %v313
        %v315 = vrot.slane %v314, 4
        %v317 = vshll.u32 %v270, 16
        %v319 = vrot.slane %v317, 5
        %v320 = vsel %vm278, %v315, %v319
        %v322 = vshrl.u32 %v254, 16
        %v324 = vrot.slane %v322, 4
        %v325 = vshll.u32 %v254, 16
        %v327 = vrot.slane %v325, 5
        %v328 = vor.u32 %v324, %v327
        %v329 = vrot.slane %v328, 4
        %v331 = vshll.u32 %v271, 16
        %v333 = vrot.slane %v331, 5
        %v334 = vsel %vm278, %v329, %v333
        %v336 = vshrl.u32 %v255, 16
        %v338 = vrot.slane %v336, 4
        %v339 = vshll.u32 %v255, 16
        %v341 = vrot.slane %v339, 5
        %v342 = vor.u32 %v338, %v341
        %v343 = vrot.slane %v342, 4
        %v345 = vshll.u32 %v272, 16
        %v347 = vrot.slane %v345, 5
        %v348 = vsel %vm278, %v343, %v347
        %v350 = vshrl.u32 %v256, 16
        %v352 = vrot.slane %v350, 4
        %v353 = vshll.u32 %v256, 16
        %v355 = vrot.slane %v353, 5
        %v356 = vor.u32 %v352, %v355
        %v357 = vrot.slane %v356, 4
        %v359 = vshll.u32 %v273, 16
        %v361 = vrot.slane %v359, 5
        %v362 = vsel %vm278, %v357, %v361
        %v364 = vshrl.u32 %v257, 16
        %v366 = vrot.slane %v364, 4
        %v367 = vshll.u32 %v257, 16
        %v369 = vrot.slane %v367, 5
        %v370 = vor.u32 %v366, %v369
        %v371 = vrot.slane %v370, 4
        %v373 = vshll.u32 %v274, 16
        %v375 = vrot.slane %v373, 5
        %v376 = vsel %vm278, %v371, %v375
        %v378 = vshrl.u32 %v258, 16
        %v380 = vrot.slane %v378, 4
        %v381 = vshll.u32 %v258, 16
        %v383 = vrot.slane %v381, 5
        %v384 = vor.u32 %v380, %v383
        %v385 = vrot.slane %v384, 4
        %v387 = vshll.u32 %v275, 16
        %v389 = vrot.slane %v387, 5
        %v390 = vsel %vm278, %v385, %v389
        %s391 = scalar_lea.vmem %s249, 144
        %v392 = vld [vmem:[%s391] sm:$0xf]
        %v393 = vld [vmem:[%s391 + $0x8] sm:$0xf]
        %v394 = vld [vmem:[%s391 + $0x10] sm:$0xf]
        %v395 = vld [vmem:[%s391 + $0x18] sm:$0xf]
        %v396 = vld [vmem:[%s391 + $0x20] sm:$0xf]
        %v397 = vld [vmem:[%s391 + $0x28] sm:$0xf]
        %v398 = vld [vmem:[%s391 + $0x30] sm:$0xf]
        %v399 = vld [vmem:[%s391 + $0x38] sm:$0xf]
        %s400 = scalar_lea.vmem %s249, 216
        %v401 = vld [vmem:[%s400] sm:$0xf]
        %v402 = vld [vmem:[%s400 + $0x8] sm:$0xf]
        %v403 = vld [vmem:[%s400 + $0x10] sm:$0xf]
        %v404 = vld [vmem:[%s400 + $0x18] sm:$0xf]
        %v405 = vld [vmem:[%s400 + $0x20] sm:$0xf]
        %v406 = vld [vmem:[%s400 + $0x28] sm:$0xf]
        %v407 = vld [vmem:[%s400 + $0x30] sm:$0xf]
        %v408 = vld [vmem:[%s400 + $0x38] sm:$0xf]
        %v409 = vld [vmem:[%s391 + $0x4] sm:$0x1]
        %v410 = vld [vmem:[%s391 + $0xc] sm:$0x1]
        %v411 = vld [vmem:[%s391 + $0x14] sm:$0x1]
        %v412 = vld [vmem:[%s391 + $0x1c] sm:$0x1]
        %v413 = vld [vmem:[%s391 + $0x24] sm:$0x1]
        %v414 = vld [vmem:[%s391 + $0x2c] sm:$0x1]
        %v415 = vld [vmem:[%s391 + $0x34] sm:$0x1]
        %v416 = vld [vmem:[%s391 + $0x3c] sm:$0x1]
        %v418 = vshrl.u32 %v392, 16
        %v420 = vrot.slane %v418, 4
        %v421 = vshll.u32 %v392, 16
        %v423 = vrot.slane %v421, 5
        %v424 = vor.u32 %v420, %v423
        %v425 = vrot.slane %v424, 4
        %v427 = vshll.u32 %v409, 16
        %v429 = vrot.slane %v427, 5
        %v430 = vsel %vm278, %v425, %v429
        %v432 = vshrl.u32 %v393, 16
        %v434 = vrot.slane %v432, 4
        %v435 = vshll.u32 %v393, 16
        %v437 = vrot.slane %v435, 5
        %v438 = vor.u32 %v434, %v437
        %v439 = vrot.slane %v438, 4
        %v441 = vshll.u32 %v410, 16
        %v443 = vrot.slane %v441, 5
        %v444 = vsel %vm278, %v439, %v443
        %v446 = vshrl.u32 %v394, 16
        %v448 = vrot.slane %v446, 4
        %v449 = vshll.u32 %v394, 16
        %v451 = vrot.slane %v449, 5
        %v452 = vor.u32 %v448, %v451
        %v453 = vrot.slane %v452, 4
        %v455 = vshll.u32 %v411, 16
        %v457 = vrot.slane %v455, 5
        %v458 = vsel %vm278, %v453, %v457
        %v460 = vshrl.u32 %v395, 16
        %v462 = vrot.slane %v460, 4
        %v463 = vshll.u32 %v395, 16
        %v465 = vrot.slane %v463, 5
        %v466 = vor.u32 %v462, %v465
        %v467 = vrot.slane %v466, 4
        %v469 = vshll.u32 %v412, 16
        %v471 = vrot.slane %v469, 5
        %v472 = vsel %vm278, %v467, %v471
        %v474 = vshrl.u32 %v396, 16
        %v476 = vrot.slane %v474, 4
        %v477 = vshll.u32 %v396, 16
        %v479 = vrot.slane %v477, 5
        %v480 = vor.u32 %v476, %v479
        %v481 = vrot.slane %v480, 4
        %v483 = vshll.u32 %v413, 16
        %v485 = vrot.slane %v483, 5
        %v486 = vsel %vm278, %v481, %v485
        %v488 = vshrl.u32 %v397, 16
        %v490 = vrot.slane %v488, 4
        %v491 = vshll.u32 %v397, 16
        %v493 = vrot.slane %v491, 5
        %v494 = vor.u32 %v490, %v493
        %v495 = vrot.slane %v494, 4
        %v497 = vshll.u32 %v414, 16
        %v499 = vrot.slane %v497, 5
        %v500 = vsel %vm278, %v495, %v499
        %v502 = vshrl.u32 %v398, 16
        %v504 = vrot.slane %v502, 4
        %v505 = vshll.u32 %v398, 16
        %v507 = vrot.slane %v505, 5
        %v508 = vor.u32 %v504, %v507
        %v509 = vrot.slane %v508, 4
        %v511 = vshll.u32 %v415, 16
        %v513 = vrot.slane %v511, 5
        %v514 = vsel %vm278, %v509, %v513
        %v516 = vshrl.u32 %v399, 16
        %v518 = vrot.slane %v516, 4
        %v519 = vshll.u32 %v399, 16
        %v521 = vrot.slane %v519, 5
        %v522 = vor.u32 %v518, %v521
        %v523 = vrot.slane %v522, 4
        %v525 = vshll.u32 %v416, 16
        %v527 = vrot.slane %v525, 5
        %v528 = vsel %vm278, %v523, %v527
        %s529 = scalar_lea.vmem %s249, 8
        %v530 = vld [vmem:[%s529] sm:$0xf]
        %v531 = vld [vmem:[%s529 + $0x8] sm:$0xf]
        %v532 = vld [vmem:[%s529 + $0x10] sm:$0xf]
        %v533 = vld [vmem:[%s529 + $0x18] sm:$0xf]
        %v534 = vld [vmem:[%s529 + $0x20] sm:$0xf]
        %v535 = vld [vmem:[%s529 + $0x28] sm:$0xf]
        %v536 = vld [vmem:[%s529 + $0x30] sm:$0xf]
        %v537 = vld [vmem:[%s529 + $0x38] sm:$0xf]
        %s538 = scalar_lea.vmem %s249, 80
        %v539 = vld [vmem:[%s538] sm:$0xf]
        %v540 = vld [vmem:[%s538 + $0x8] sm:$0xf]
        %v541 = vld [vmem:[%s538 + $0x10] sm:$0xf]
        %v542 = vld [vmem:[%s538 + $0x18] sm:$0xf]
        %v543 = vld [vmem:[%s538 + $0x20] sm:$0xf]
        %v544 = vld [vmem:[%s538 + $0x28] sm:$0xf]
        %v545 = vld [vmem:[%s538 + $0x30] sm:$0xf]
        %v546 = vld [vmem:[%s538 + $0x38] sm:$0xf]
        %v547 = vld [vmem:[%s529 + $0x4] sm:$0x1]
        %v548 = vld [vmem:[%s529 + $0xc] sm:$0x1]
        %v549 = vld [vmem:[%s529 + $0x14] sm:$0x1]
        %v550 = vld [vmem:[%s529 + $0x1c] sm:$0x1]
        %v551 = vld [vmem:[%s529 + $0x24] sm:$0x1]
        %v552 = vld [vmem:[%s529 + $0x2c] sm:$0x1]
        %v553 = vld [vmem:[%s529 + $0x34] sm:$0x1]
        %v554 = vld [vmem:[%s529 + $0x3c] sm:$0x1]
        %v556 = vshrl.u32 %v530, 16
        %v558 = vrot.slane %v556, 4
        %v559 = vshll.u32 %v530, 16
        %v561 = vrot.slane %v559, 5
        %v562 = vor.u32 %v558, %v561
        %v563 = vrot.slane %v562, 4
        %v565 = vshll.u32 %v547, 16
        %v567 = vrot.slane %v565, 5
        %v568 = vsel %vm278, %v563, %v567
        %v570 = vshrl.u32 %v531, 16
        %v572 = vrot.slane %v570, 4
        %v573 = vshll.u32 %v531, 16
        %v575 = vrot.slane %v573, 5
        %v576 = vor.u32 %v572, %v575
        %v577 = vrot.slane %v576, 4
        %v579 = vshll.u32 %v548, 16
        %v581 = vrot.slane %v579, 5
        %v582 = vsel %vm278, %v577, %v581
        %v584 = vshrl.u32 %v532, 16
        %v586 = vrot.slane %v584, 4
        %v587 = vshll.u32 %v532, 16
        %v589 = vrot.slane %v587, 5
        %v590 = vor.u32 %v586, %v589
        %v591 = vrot.slane %v590, 4
        %v593 = vshll.u32 %v549, 16
        %v595 = vrot.slane %v593, 5
        %v596 = vsel %vm278, %v591, %v595
        %v598 = vshrl.u32 %v533, 16
        %v600 = vrot.slane %v598, 4
        %v601 = vshll.u32 %v533, 16
        %v603 = vrot.slane %v601, 5
        %v604 = vor.u32 %v600, %v603
        %v605 = vrot.slane %v604, 4
        %v607 = vshll.u32 %v550, 16
        %v609 = vrot.slane %v607, 5
        %v610 = vsel %vm278, %v605, %v609
        %v612 = vshrl.u32 %v534, 16
        %v614 = vrot.slane %v612, 4
        %v615 = vshll.u32 %v534, 16
        %v617 = vrot.slane %v615, 5
        %v618 = vor.u32 %v614, %v617
        %v619 = vrot.slane %v618, 4
        %v621 = vshll.u32 %v551, 16
        %v623 = vrot.slane %v621, 5
        %v624 = vsel %vm278, %v619, %v623
        %v626 = vshrl.u32 %v535, 16
        %v628 = vrot.slane %v626, 4
        %v629 = vshll.u32 %v535, 16
        %v631 = vrot.slane %v629, 5
        %v632 = vor.u32 %v628, %v631
        %v633 = vrot.slane %v632, 4
        %v635 = vshll.u32 %v552, 16
        %v637 = vrot.slane %v635, 5
        %v638 = vsel %vm278, %v633, %v637
        %v640 = vshrl.u32 %v536, 16
        %v642 = vrot.slane %v640, 4
        %v643 = vshll.u32 %v536, 16
        %v645 = vrot.slane %v643, 5
        %v646 = vor.u32 %v642, %v645
        %v647 = vrot.slane %v646, 4
        %v649 = vshll.u32 %v553, 16
        %v651 = vrot.slane %v649, 5
        %v652 = vsel %vm278, %v647, %v651
        %v654 = vshrl.u32 %v537, 16
        %v656 = vrot.slane %v654, 4
        %v657 = vshll.u32 %v537, 16
        %v659 = vrot.slane %v657, 5
        %v660 = vor.u32 %v656, %v659
        %v661 = vrot.slane %v660, 4
        %v663 = vshll.u32 %v554, 16
        %v665 = vrot.slane %v663, 5
        %v666 = vsel %vm278, %v661, %v665
        %v675 = vunpack.c.l.b16 %v251
        %v676 = vunpack.c.l.b16 %v252
        %v677 = vunpack.c.l.b16 %v253
        %v678 = vunpack.c.l.b16 %v254
        %v679 = vunpack.c.l.b16 %v255
        %v680 = vunpack.c.l.b16 %v256
        %v681 = vunpack.c.l.b16 %v257
        %v682 = vunpack.c.l.b16 %v258
        %v683 = vpack.c.b16 %v676, %v675
        %v684 = vpack.c.b16 %v678, %v677
        %v685 = vpack.c.b16 %v680, %v679
        %v686 = vpack.c.b16 %v682, %v681
        %v695 = vunpack.c.l.b16 %v260
        %v696 = vunpack.c.l.b16 %v261
        %v697 = vunpack.c.l.b16 %v262
        %v698 = vunpack.c.l.b16 %v263
        %v699 = vunpack.c.l.b16 %v264
        %v700 = vunpack.c.l.b16 %v265
        %v701 = vunpack.c.l.b16 %v266
        %v702 = vunpack.c.l.b16 %v267
        %v703 = vpack.c.b16 %v696, %v695
        %v704 = vpack.c.b16 %v698, %v697
        %v705 = vpack.c.b16 %v700, %v699
        %v706 = vpack.c.b16 %v702, %v701
        %707 = vrot.lane.b32.xlu0 %v703, 32
        %v708 = vpop.permute.xlu0 %707
        %709 = vrot.lane.b32.xlu0 %v704, 32
        %v710 = vpop.permute.xlu0 %709
        %711 = vrot.lane.b32.xlu0 %v705, 32
        %v712 = vpop.permute.xlu0 %711
        %713 = vrot.lane.b32.xlu0 %v706, 32
        %v714 = vpop.permute.xlu0 %713
        %v715 = vunpack.c.l.b16 %v292
        %v716 = vunpack.c.l.b16 %v306
        %v717 = vunpack.c.l.b16 %v320
        %v718 = vunpack.c.l.b16 %v334
        %v719 = vunpack.c.l.b16 %v348
        %v720 = vunpack.c.l.b16 %v362
        %v721 = vunpack.c.l.b16 %v376
        %v722 = vunpack.c.l.b16 %v390
        %v723 = vpack.c.b16 %v716, %v715
        %v724 = vpack.c.b16 %v718, %v717
        %v725 = vpack.c.b16 %v720, %v719
        %v726 = vpack.c.b16 %v722, %v721
        %727 = vrot.lane.b32.xlu0 %v723, 64
        %v728 = vpop.permute.xlu0 %727
        %729 = vrot.lane.b32.xlu0 %v724, 64
        %v730 = vpop.permute.xlu0 %729
        %731 = vrot.lane.b32.xlu0 %v725, 64
        %v732 = vpop.permute.xlu0 %731
        %733 = vrot.lane.b32.xlu0 %v726, 64
        %v734 = vpop.permute.xlu0 %733
        %v743 = vunpack.c.l.b16 %v392
        %v744 = vunpack.c.l.b16 %v393
        %v745 = vunpack.c.l.b16 %v394
        %v746 = vunpack.c.l.b16 %v395
        %v747 = vunpack.c.l.b16 %v396
        %v748 = vunpack.c.l.b16 %v397
        %v749 = vunpack.c.l.b16 %v398
        %v750 = vunpack.c.l.b16 %v399
        %v751 = vpack.c.b16 %v744, %v743
        %v752 = vpack.c.b16 %v746, %v745
        %v753 = vpack.c.b16 %v748, %v747
        %v754 = vpack.c.b16 %v750, %v749
        %755 = vrot.lane.b32.xlu0 %v751, 96
        %v756 = vpop.permute.xlu0 %755
        %757 = vrot.lane.b32.xlu0 %v752, 96
        %v758 = vpop.permute.xlu0 %757
        %759 = vrot.lane.b32.xlu0 %v753, 96
        %v760 = vpop.permute.xlu0 %759
        %761 = vrot.lane.b32.xlu0 %v754, 96
        %v762 = vpop.permute.xlu0 %761
        %v771 = vunpack.c.l.b16 %v401
        %v772 = vunpack.c.l.b16 %v402
        %v773 = vunpack.c.l.b16 %v403
        %v774 = vunpack.c.l.b16 %v404
        %v775 = vunpack.c.l.b16 %v405
        %v776 = vunpack.c.l.b16 %v406
        %v777 = vunpack.c.l.b16 %v407
        %v778 = vunpack.c.l.b16 %v408
        %v779 = vpack.c.b16 %v772, %v771
        %v780 = vpack.c.b16 %v774, %v773
        %v781 = vpack.c.b16 %v776, %v775
        %v782 = vpack.c.b16 %v778, %v777
        %v783 = vunpack.c.l.b16 %v430
        %v784 = vunpack.c.l.b16 %v444
        %v785 = vunpack.c.l.b16 %v458
        %v786 = vunpack.c.l.b16 %v472
        %v787 = vunpack.c.l.b16 %v486
        %v788 = vunpack.c.l.b16 %v500
        %v789 = vunpack.c.l.b16 %v514
        %v790 = vunpack.c.l.b16 %v528
        %v791 = vpack.c.b16 %v784, %v783
        %v792 = vpack.c.b16 %v786, %v785
        %v793 = vpack.c.b16 %v788, %v787
        %v794 = vpack.c.b16 %v790, %v789
        %795 = vrot.lane.b32.xlu0 %v791, 32
        %v796 = vpop.permute.xlu0 %795
        %797 = vrot.lane.b32.xlu0 %v792, 32
        %v798 = vpop.permute.xlu0 %797
        %799 = vrot.lane.b32.xlu0 %v793, 32
        %v800 = vpop.permute.xlu0 %799
        %801 = vrot.lane.b32.xlu0 %v794, 32
        %v802 = vpop.permute.xlu0 %801
        %v811 = vunpack.c.l.b16 %v530
        %v812 = vunpack.c.l.b16 %v531
        %v813 = vunpack.c.l.b16 %v532
        %v814 = vunpack.c.l.b16 %v533
        %v815 = vunpack.c.l.b16 %v534
        %v816 = vunpack.c.l.b16 %v535
        %v817 = vunpack.c.l.b16 %v536
        %v818 = vunpack.c.l.b16 %v537
        %v819 = vpack.c.b16 %v812, %v811
        %v820 = vpack.c.b16 %v814, %v813
        %v821 = vpack.c.b16 %v816, %v815
        %v822 = vpack.c.b16 %v818, %v817
        %823 = vrot.lane.b32.xlu0 %v819, 64
        %v824 = vpop.permute.xlu0 %823
        %825 = vrot.lane.b32.xlu0 %v820, 64
        %v826 = vpop.permute.xlu0 %825
        %827 = vrot.lane.b32.xlu0 %v821, 64
        %v828 = vpop.permute.xlu0 %827
        %829 = vrot.lane.b32.xlu0 %v822, 64
        %v830 = vpop.permute.xlu0 %829
        %v839 = vunpack.c.l.b16 %v539
        %v840 = vunpack.c.l.b16 %v540
        %v841 = vunpack.c.l.b16 %v541
        %v842 = vunpack.c.l.b16 %v542
        %v843 = vunpack.c.l.b16 %v543
        %v844 = vunpack.c.l.b16 %v544
        %v845 = vunpack.c.l.b16 %v545
        %v846 = vunpack.c.l.b16 %v546
        %v847 = vpack.c.b16 %v840, %v839
        %v848 = vpack.c.b16 %v842, %v841
        %v849 = vpack.c.b16 %v844, %v843
        %v850 = vpack.c.b16 %v846, %v845
        %851 = vrot.lane.b32.xlu0 %v847, 96
        %v852 = vpop.permute.xlu0 %851
        %853 = vrot.lane.b32.xlu0 %v848, 96
        %v854 = vpop.permute.xlu0 %853
        %855 = vrot.lane.b32.xlu0 %v849, 96
        %v856 = vpop.permute.xlu0 %855
        %857 = vrot.lane.b32.xlu0 %v850, 96
        %v858 = vpop.permute.xlu0 %857
        %v859 = vunpack.c.l.b16 %v568
        %v860 = vunpack.c.l.b16 %v582
        %v861 = vunpack.c.l.b16 %v596
        %v862 = vunpack.c.l.b16 %v610
        %v863 = vunpack.c.l.b16 %v624
        %v864 = vunpack.c.l.b16 %v638
        %v865 = vunpack.c.l.b16 %v652
        %v866 = vunpack.c.l.b16 %v666
        %v867 = vpack.c.b16 %v860, %v859
        %v868 = vpack.c.b16 %v862, %v861
        %v869 = vpack.c.b16 %v864, %v863
        %v870 = vpack.c.b16 %v866, %v865
        %vm871 = vcmask 261120
        %v874 = vsel %vm871, %v683, %v708
        %v877 = vsel %vm871, %v684, %v710
        %v880 = vsel %vm871, %v685, %v712
        %v883 = vsel %vm871, %v686, %v714
        %vm884 = vcmask 523264
        %v886 = vsel %vm884, %v874, %v728
        %v888 = vsel %vm884, %v877, %v730
        %v890 = vsel %vm884, %v880, %v732
        %v892 = vsel %vm884, %v883, %v734
        %vm893 = vcmask 785408
        %v895 = vsel %vm893, %v886, %v756
        %v898 = vsel %vm893, %v888, %v758
        %v901 = vsel %vm893, %v890, %v760
        %v904 = vsel %vm893, %v892, %v762
        %v908 = vsel %vm871, %v779, %v796
        %v911 = vsel %vm871, %v780, %v798
        %v914 = vsel %vm871, %v781, %v800
        %v917 = vsel %vm871, %v782, %v802
        %v919 = vsel %vm884, %v908, %v824
        %v921 = vsel %vm884, %v911, %v826
        %v923 = vsel %vm884, %v914, %v828
        %v925 = vsel %vm884, %v917, %v830
        %v927 = vsel %vm893, %v919, %v852
        %v930 = vsel %vm893, %v921, %v854
        %v933 = vsel %vm893, %v923, %v856
        %v936 = vsel %vm893, %v925, %v858
        %v938 = vld [vmem:[%s1] sm:$0xf]
        %v939 = vld [vmem:[%s1 + $0x4] sm:$0xf]
        %v940 = vld [vmem:[%s1 + $0x8] sm:$0xf]
        %v941 = vld [vmem:[%s1 + $0xc] sm:$0xf]
        %v942 = vld [vmem:[%s1 + $0x10] sm:$0xf]
        %v943 = vld [vmem:[%s1 + $0x14] sm:$0xf]
        %v944 = vld [vmem:[%s1 + $0x18] sm:$0xf]
        %v945 = vld [vmem:[%s1 + $0x1c] sm:$0xf]
        %v946 = vld [vmem:[%s1 + $0x20] sm:$0xf]
        %v947 = vld [vmem:[%s1 + $0x24] sm:$0xf]
        %v948 = vld [vmem:[%s1 + $0x28] sm:$0xf]
        %v949 = vld [vmem:[%s1 + $0x2c] sm:$0xf]
        %v950 = vld [vmem:[%s1 + $0x30] sm:$0xf]
        %v951 = vld [vmem:[%s1 + $0x34] sm:$0xf]
        %v952 = vld [vmem:[%s1 + $0x38] sm:$0xf]
        %v953 = vld [vmem:[%s1 + $0x3c] sm:$0xf]
        %v954 = vld [vmem:[%s1 + $0x40] sm:$0xf]
        %v955 = vld [vmem:[%s1 + $0x44] sm:$0xf]
        %v956 = vld [vmem:[%s1 + $0x48] sm:$0xf]
        %v957 = vld [vmem:[%s1 + $0x4c] sm:$0xf]
        %v958 = vld [vmem:[%s1 + $0x50] sm:$0xf]
        %v959 = vld [vmem:[%s1 + $0x54] sm:$0xf]
        %v960 = vld [vmem:[%s1 + $0x58] sm:$0xf]
        %v961 = vld [vmem:[%s1 + $0x5c] sm:$0xf]
        %v962 = vld [vmem:[%s1 + $0x60] sm:$0xf]
        %v963 = vld [vmem:[%s1 + $0x64] sm:$0xf]
        %v964 = vld [vmem:[%s1 + $0x68] sm:$0xf]
        %v965 = vld [vmem:[%s1 + $0x6c] sm:$0xf]
        %v966 = vld [vmem:[%s1 + $0x70] sm:$0xf]
        %v967 = vld [vmem:[%s1 + $0x74] sm:$0xf]
        %v968 = vld [vmem:[%s1 + $0x78] sm:$0xf]
        %v969 = vld [vmem:[%s1 + $0x7c] sm:$0xf]
        %v970 = vld [vmem:[%s1 + $0x80] sm:$0xf]
        %v971 = vld [vmem:[%s1 + $0x84] sm:$0xf]
        %v972 = vld [vmem:[%s1 + $0x88] sm:$0xf]
        %v973 = vld [vmem:[%s1 + $0x8c] sm:$0xf]
        %v974 = vld [vmem:[%s2] sm:$0x1]
        %v976 = vlaneseq
        %v977 = vshrl.u32 %v976, 7
        %v978 = vsub.s32 0, %v977
        %v979 = vrot.slane %v974, %v978
        %v1017 = vunpack.c.l.b16 %v938
        %v1018 = vunpack.c.l.b16 %v939
        %v1019 = vunpack.c.l.b16 %v940
        %v1020 = vunpack.c.l.b16 %v941
        %v1021 = vunpack.c.l.b16 %v942
        %v1022 = vunpack.c.l.b16 %v943
        %v1023 = vunpack.c.l.b16 %v944
        %v1024 = vunpack.c.l.b16 %v945
        %v1025 = vunpack.c.l.b16 %v946
        %v1026 = vunpack.c.l.b16 %v947
        %v1027 = vunpack.c.l.b16 %v948
        %v1028 = vunpack.c.l.b16 %v949
        %v1029 = vunpack.c.l.b16 %v950
        %v1030 = vunpack.c.l.b16 %v951
        %v1031 = vunpack.c.l.b16 %v952
        %v1032 = vunpack.c.l.b16 %v953
        %v1033 = vunpack.c.l.b16 %v954
        %v1034 = vunpack.c.l.b16 %v955
        %v1035 = vunpack.c.l.b16 %v956
        %v1036 = vunpack.c.l.b16 %v957
        %v1037 = vunpack.c.l.b16 %v958
        %v1038 = vunpack.c.l.b16 %v959
        %v1039 = vunpack.c.l.b16 %v960
        %v1040 = vunpack.c.l.b16 %v961
        %v1041 = vunpack.c.l.b16 %v962
        %v1042 = vunpack.c.l.b16 %v963
        %v1043 = vunpack.c.l.b16 %v964
        %v1044 = vunpack.c.l.b16 %v965
        %v1045 = vunpack.c.l.b16 %v966
        %v1046 = vunpack.c.l.b16 %v967
        %v1047 = vunpack.c.l.b16 %v968
        %v1048 = vunpack.c.l.b16 %v969
        %v1049 = vunpack.c.l.b16 %v970
        %v1050 = vunpack.c.l.b16 %v971
        %v1051 = vunpack.c.l.b16 %v972
        %v1052 = vunpack.c.l.b16 %v973
        %v1053 = vpack.c.b16 %v1018, %v1017
        %v1054 = vpack.c.b16 %v1020, %v1019
        %v1055 = vpack.c.b16 %v1022, %v1021
        %v1056 = vpack.c.b16 %v1024, %v1023
        %v1057 = vpack.c.b16 %v1026, %v1025
        %v1058 = vpack.c.b16 %v1028, %v1027
        %v1059 = vpack.c.b16 %v1030, %v1029
        %v1060 = vpack.c.b16 %v1032, %v1031
        %v1061 = vpack.c.b16 %v1034, %v1033
        %v1062 = vpack.c.b16 %v1036, %v1035
        %v1063 = vpack.c.b16 %v1038, %v1037
        %v1064 = vpack.c.b16 %v1040, %v1039
        %v1065 = vpack.c.b16 %v1042, %v1041
        %v1066 = vpack.c.b16 %v1044, %v1043
        %v1067 = vpack.c.b16 %v1046, %v1045
        %v1068 = vpack.c.b16 %v1048, %v1047
        %v1069 = vpack.c.b16 %v1050, %v1049
        %v1070 = vpack.c.b16 %v1052, %v1051
        %v1090 = vsel %vm871, %v867, 0
        %v1093 = vsel %vm871, %v868, 0
        %v1096 = vsel %vm871, %v869, 0
        %v1099 = vsel %vm871, %v870, 0
        %1101 = vmatprep.subr.bf16.mxu0 0
        %1102 = vmatpush1.bf16.msra.mxu0 %v1060
        %1103 = vmatprep.subr.bf16.mxu0 0
        %1104 = vmatpush1.bf16.msra.mxu0 %v1059
        %1105 = vmatprep.subr.bf16.mxu0 0
        %1106 = vmatpush1.bf16.msra.mxu0 %v1058
        %1107 = vmatprep.subr.bf16.mxu0 0
        %1108 = vmatpush1.bf16.msra.mxu0 %v1057
        %1109 = vmatprep.subr.bf16.mxu0 0
        %1110 = vmatpush1.bf16.msra.mxu0 %v1056
        %1111 = vmatprep.subr.bf16.mxu0 0
        %1112 = vmatpush1.bf16.msra.mxu0 %v1055
        %1113 = vmatprep.subr.bf16.mxu0 0
        %1114 = vmatpush1.bf16.msra.mxu0 %v1054
        %1115 = vmatprep.subr.bf16.mxu0 0
        %1116 = vmatpush1.bf16.msra.mxu0 %v1053
        %1117 = vmatprep.subr.bf16.mxu0 0
        %1118 = vmatpush2.bf16.msra.mxu0 %v1068
        %1119 = vmatprep.subr.bf16.mxu0 0
        %1120 = vmatpush2.bf16.msra.mxu0 %v1067
        %1121 = vmatprep.subr.bf16.mxu0 0
        %1122 = vmatpush2.bf16.msra.mxu0 %v1066
        %1123 = vmatprep.subr.bf16.mxu0 0
        %1124 = vmatpush2.bf16.msra.mxu0 %v1065
        %1125 = vmatprep.subr.bf16.mxu0 0
        %1126 = vmatpush2.bf16.msra.mxu0 %v1064
        %1127 = vmatprep.subr.bf16.mxu0 0
        %1128 = vmatpush2.bf16.msra.mxu0 %v1063
        %1129 = vmatprep.subr.bf16.mxu0 0
        %1130 = vmatpush2.bf16.msra.mxu0 %v1062
        %1131 = vmatprep.subr.bf16.mxu0 0
        %1132 = vmatpush2.bf16.msra.mxu0 %v1061
        %1133 = vmatprep.mubr.bf16.mxu0 %v927
        %1134 = vmatmul.mubr.bf16.gmra.mxu0 %v895
        %v1135 = vpop.f32.mrf.mxu0
        %v1136 = vadd.f32 %v979, %v1135
        %v1137 = vpop.f32.mrf.mxu0
        %v1138 = vpop.f32.mrf.mxu0
        %v1139 = vadd.f32 %v979, %v1138
        %v1140 = vpop.f32.mrf.mxu0
        %1141 = vmatprep.mubr.bf16.mxu0 %v930
        %1142 = vmatmul.mubr.bf16.gmra.mxu0 %v898
        %v1143 = vpop.f32.mrf.mxu0
        %v1144 = vadd.f32 %v979, %v1143
        %v1145 = vpop.f32.mrf.mxu0
        %v1146 = vpop.f32.mrf.mxu0
        %v1147 = vadd.f32 %v979, %v1146
        %v1148 = vpop.f32.mrf.mxu0
        %1149 = vmatprep.mubr.bf16.mxu0 %v933
        %1150 = vmatmul.mubr.bf16.gmra.mxu0 %v901
        %v1151 = vpop.f32.mrf.mxu0
        %v1152 = vadd.f32 %v979, %v1151
        %v1153 = vpop.f32.mrf.mxu0
        %v1154 = vpop.f32.mrf.mxu0
        %v1155 = vadd.f32 %v979, %v1154
        %v1156 = vpop.f32.mrf.mxu0
        %1157 = vmatprep.mubr.bf16.mxu0 %v936
        %1158 = vmatmul.mubr.bf16.gmra.mxu0 %v904
        %v1159 = vpop.f32.mrf.mxu0
        %v1160 = vadd.f32 %v979, %v1159
        %v1161 = vpop.f32.mrf.mxu0
        %v1162 = vpop.f32.mrf.mxu0
        %v1163 = vadd.f32 %v979, %v1162
        %v1164 = vpop.f32.mrf.mxu0
        %1165 = vdwg.mxu0
        %1166 = vmatprep.subr.bf16.mxu0 0
        %1167 = vmatpush1.bf16.msra.mxu0 0
        %1168 = vmatprep.subr.bf16.mxu0 0
        %1169 = vmatpush1.bf16.msra.mxu0 0
        %1170 = vmatprep.subr.bf16.mxu0 0
        %1171 = vmatpush1.bf16.msra.mxu0 0
        %1172 = vmatprep.subr.bf16.mxu0 0
        %1173 = vmatpush1.bf16.msra.mxu0 0
        %1174 = vmatprep.subr.bf16.mxu0 0
        %1175 = vmatpush1.bf16.msra.mxu0 0
        %1176 = vmatprep.subr.bf16.mxu0 0
        %1177 = vmatpush1.bf16.msra.mxu0 0
        %1178 = vmatprep.subr.bf16.mxu0 0
        %1179 = vmatpush1.bf16.msra.mxu0 %v1070
        %1180 = vmatprep.subr.bf16.mxu0 0
        %1181 = vmatpush1.bf16.msra.mxu0 %v1069
        %1182 = vmatprep.subr.bf16.mxu0 0
        %1183 = vmatpush2.bf16.msra.mxu0 0
        %1184 = vmatprep.subr.bf16.mxu0 0
        %1185 = vmatpush2.bf16.msra.mxu0 0
        %1186 = vmatprep.subr.bf16.mxu0 0
        %1187 = vmatpush2.bf16.msra.mxu0 0
        %1188 = vmatprep.subr.bf16.mxu0 0
        %1189 = vmatpush2.bf16.msra.mxu0 0
        %1190 = vmatprep.subr.bf16.mxu0 0
        %1191 = vmatpush2.bf16.msra.mxu0 0
        %1192 = vmatprep.subr.bf16.mxu0 0
        %1193 = vmatpush2.bf16.msra.mxu0 0
        %1194 = vmatprep.subr.bf16.mxu0 0
        %1195 = vmatpush2.bf16.msra.mxu0 0
        %1196 = vmatprep.subr.bf16.mxu0 0
        %1197 = vmatpush2.bf16.msra.mxu0 0
        %1198 = vmatprep.mubr.bf16.mxu0 0
        %1199 = vmatmul.mubr.bf16.gmra.mxu0 %v1090
        %v1200 = vpop.f32.mrf.mxu0
        %v1201 = vadd.f32 %v1136, %v1200
        %v1202 = vpop.f32.mrf.mxu0
        %v1203 = vpop.f32.mrf.mxu0
        %v1204 = vadd.f32 %v1139, %v1203
        %v1205 = vpop.f32.mrf.mxu0
        %1206 = vmatprep.mubr.bf16.mxu0 0
        %1207 = vmatmul.mubr.bf16.gmra.mxu0 %v1093
        %v1208 = vpop.f32.mrf.mxu0
        %v1209 = vadd.f32 %v1144, %v1208
        %v1210 = vpop.f32.mrf.mxu0
        %v1211 = vpop.f32.mrf.mxu0
        %v1212 = vadd.f32 %v1147, %v1211
        %v1213 = vpop.f32.mrf.mxu0
        %1214 = vmatprep.mubr.bf16.mxu0 0
        %1215 = vmatmul.mubr.bf16.gmra.mxu0 %v1096
        %v1216 = vpop.f32.mrf.mxu0
        %v1217 = vadd.f32 %v1152, %v1216
        %v1218 = vpop.f32.mrf.mxu0
        %v1219 = vpop.f32.mrf.mxu0
        %v1220 = vadd.f32 %v1155, %v1219
        %v1221 = vpop.f32.mrf.mxu0
        %1222 = vmatprep.mubr.bf16.mxu0 0
        %1223 = vmatmul.mubr.bf16.gmra.mxu0 %v1099
        %v1224 = vpop.f32.mrf.mxu0
        %v1225 = vadd.f32 %v1160, %v1224
        %v1226 = vpop.f32.mrf.mxu0
        %v1227 = vpop.f32.mrf.mxu0
        %v1228 = vadd.f32 %v1163, %v1227
        %v1229 = vpop.f32.mrf.mxu0
        %1230 = vdwg.mxu0
        %v1231 = vmax.f32 %v1201, 0.0
        %v1232 = vmax.f32 %v1204, 0.0
        %v1233 = vmax.f32 %v1209, 0.0
        %v1234 = vmax.f32 %v1212, 0.0
        %v1235 = vmax.f32 %v1217, 0.0
        %v1236 = vmax.f32 %v1220, 0.0
        %v1237 = vmax.f32 %v1225, 0.0
        %v1238 = vmax.f32 %v1228, 0.0
        %v1239 = vpack.c.bf16 %v1232, %v1231
        %v1240 = vpack.c.bf16 %v1234, %v1233
        %v1241 = vpack.c.bf16 %v1236, %v1235
        %v1242 = vpack.c.bf16 %v1238, %v1237
        %vm1243 = vcmask 519168
        %1244 = vst.msk [vmem:[#allocation2] sm:$0xf] %vm1243, 0
        %vm1245 = vcmask 516096
        %1246 = vst.msk [vmem:[#allocation2 + $0x4] sm:$0x1] %vm1245, 0
        %s1247 = scalar_lea.vmem [#allocation2], 72
        %1248 = vst.msk [vmem:[%s1247] sm:$0xf] %vm1243, 0
        %1249 = vst.msk [vmem:[%s1247 + $0x4] sm:$0x1] %vm1245, 0
        %s1250 = scalar_lea.vmem [#allocation2], 8
        %vm1251 = vcmask 516096
        %vm1252 = vsmask.f32 256
        %vm1253 = vmand %vm1251, %vm1252
        %v1254 = vld [vmem:[%s1250] sm:$0x1]
        %v1255 = vsel %vm1253, 0, %v1254
        %1256 = vst [vmem:[%s1250] sm:$0x1] %v1255
        %v1257 = vld [vmem:[%s1250 + $0x8] sm:$0x1]
        %v1258 = vsel %vm1253, 0, %v1257
        %1259 = vst [vmem:[%s1250 + $0x8] sm:$0x1] %v1258
        %v1260 = vld [vmem:[%s1250 + $0x10] sm:$0x1]
        %v1261 = vsel %vm1253, 0, %v1260
        %1262 = vst [vmem:[%s1250 + $0x10] sm:$0x1] %v1261
        %v1263 = vld [vmem:[%s1250 + $0x18] sm:$0x1]
        %v1264 = vsel %vm1253, 0, %v1263
        %1265 = vst [vmem:[%s1250 + $0x18] sm:$0x1] %v1264
        %v1266 = vld [vmem:[%s1250 + $0x20] sm:$0x1]
        %v1267 = vsel %vm1253, 0, %v1266
        %1268 = vst [vmem:[%s1250 + $0x20] sm:$0x1] %v1267
        %v1269 = vld [vmem:[%s1250 + $0x28] sm:$0x1]
        %v1270 = vsel %vm1253, 0, %v1269
        %1271 = vst [vmem:[%s1250 + $0x28] sm:$0x1] %v1270
        %v1272 = vld [vmem:[%s1250 + $0x30] sm:$0x1]
        %v1273 = vsel %vm1253, 0, %v1272
        %1274 = vst [vmem:[%s1250 + $0x30] sm:$0x1] %v1273
        %v1275 = vld [vmem:[%s1250 + $0x38] sm:$0x1]
        %v1276 = vsel %vm1253, 0, %v1275
        %1277 = vst [vmem:[%s1250 + $0x38] sm:$0x1] %v1276
        %vm1278 = vsmask.f32 7938
        %vm1279 = vmand %vm1251, %vm1278
        %v1280 = vld [vmem:[%s1250 + $0x4] sm:$0x1]
        %v1281 = vsel %vm1279, 0, %v1280
        %1282 = vst [vmem:[%s1250 + $0x4] sm:$0x1] %v1281
        %v1283 = vld [vmem:[%s1250 + $0xc] sm:$0x1]
        %v1284 = vsel %vm1279, 0, %v1283
        %1285 = vst [vmem:[%s1250 + $0xc] sm:$0x1] %v1284
        %v1286 = vld [vmem:[%s1250 + $0x14] sm:$0x1]
        %v1287 = vsel %vm1279, 0, %v1286
        %1288 = vst [vmem:[%s1250 + $0x14] sm:$0x1] %v1287
        %v1289 = vld [vmem:[%s1250 + $0x1c] sm:$0x1]
        %v1290 = vsel %vm1279, 0, %v1289
        %1291 = vst [vmem:[%s1250 + $0x1c] sm:$0x1] %v1290
        %v1292 = vld [vmem:[%s1250 + $0x24] sm:$0x1]
        %v1293 = vsel %vm1279, 0, %v1292
        %1294 = vst [vmem:[%s1250 + $0x24] sm:$0x1] %v1293
        %v1295 = vld [vmem:[%s1250 + $0x2c] sm:$0x1]
        %v1296 = vsel %vm1279, 0, %v1295
        %1297 = vst [vmem:[%s1250 + $0x2c] sm:$0x1] %v1296
        %v1298 = vld [vmem:[%s1250 + $0x34] sm:$0x1]
        %v1299 = vsel %vm1279, 0, %v1298
        %1300 = vst [vmem:[%s1250 + $0x34] sm:$0x1] %v1299
        %v1301 = vld [vmem:[%s1250 + $0x3c] sm:$0x1]
        %v1302 = vsel %vm1279, 0, %v1301
        %1303 = vst [vmem:[%s1250 + $0x3c] sm:$0x1] %v1302
        %v1308 = vunpack.c.l.b16 %v1239
        %v1309 = vunpack.c.h.b16 %v1239
        %v1310 = vunpack.c.l.b16 %v1240
        %v1311 = vunpack.c.h.b16 %v1240
        %v1312 = vunpack.c.l.b16 %v1241
        %v1313 = vunpack.c.h.b16 %v1241
        %v1314 = vunpack.c.l.b16 %v1242
        %v1315 = vunpack.c.h.b16 %v1242
        %v1316 = vpack.c.b16 %v1308, %v1308
        %v1317 = vpack.c.b16 %v1309, %v1309
        %v1318 = vpack.c.b16 %v1310, %v1310
        %v1319 = vpack.c.b16 %v1311, %v1311
        %v1320 = vpack.c.b16 %v1312, %v1312
        %v1321 = vpack.c.b16 %v1313, %v1313
        %v1322 = vpack.c.b16 %v1314, %v1314
        %v1323 = vpack.c.b16 %v1315, %v1315
        %v1325 = vshrl.u32 %v1316, 16
        %v1327 = vrot.slane %v1325, 7
        %v1328 = vshll.u32 %v1316, 16
        %v1330 = vor.u32 %v1327, %v1328
        %v1331 = vrot.slane %v1327, 4
        %v1333 = vshrl.u32 %v1317, 16
        %v1335 = vrot.slane %v1333, 7
        %v1336 = vshll.u32 %v1317, 16
        %v1338 = vor.u32 %v1335, %v1336
        %v1339 = vrot.slane %v1335, 4
        %v1341 = vshrl.u32 %v1318, 16
        %v1343 = vrot.slane %v1341, 7
        %v1344 = vshll.u32 %v1318, 16
        %v1346 = vor.u32 %v1343, %v1344
        %v1347 = vrot.slane %v1343, 4
        %v1349 = vshrl.u32 %v1319, 16
        %v1351 = vrot.slane %v1349, 7
        %v1352 = vshll.u32 %v1319, 16
        %v1354 = vor.u32 %v1351, %v1352
        %v1355 = vrot.slane %v1351, 4
        %v1357 = vshrl.u32 %v1320, 16
        %v1359 = vrot.slane %v1357, 7
        %v1360 = vshll.u32 %v1320, 16
        %v1362 = vor.u32 %v1359, %v1360
        %v1363 = vrot.slane %v1359, 4
        %v1365 = vshrl.u32 %v1321, 16
        %v1367 = vrot.slane %v1365, 7
        %v1368 = vshll.u32 %v1321, 16
        %v1370 = vor.u32 %v1367, %v1368
        %v1371 = vrot.slane %v1367, 4
        %v1373 = vshrl.u32 %v1322, 16
        %v1375 = vrot.slane %v1373, 7
        %v1376 = vshll.u32 %v1322, 16
        %v1378 = vor.u32 %v1375, %v1376
        %v1379 = vrot.slane %v1375, 4
        %v1381 = vshrl.u32 %v1323, 16
        %v1383 = vrot.slane %v1381, 7
        %v1384 = vshll.u32 %v1323, 16
        %v1386 = vor.u32 %v1383, %v1384
        %v1387 = vrot.slane %v1383, 4
        %vm1404 = vcmask 519168
        %vm1405 = vmand %vm1404, %vm1278
        %v1406 = vld [vmem:[%s1250] sm:$0xf]
        %v1407 = vsel %vm1405, %v1330, %v1406
        %1408 = vst [vmem:[%s1250] sm:$0xf] %v1407
        %v1409 = vld [vmem:[%s1250 + $0x4] sm:$0x1]
        %v1410 = vsel %vm1253, %v1331, %v1409
        %1411 = vst [vmem:[%s1250 + $0x4] sm:$0x1] %v1410
        %v1412 = vld [vmem:[%s1250 + $0x8] sm:$0xf]
        %v1413 = vsel %vm1405, %v1338, %v1412
        %1414 = vst [vmem:[%s1250 + $0x8] sm:$0xf] %v1413
        %v1415 = vld [vmem:[%s1250 + $0xc] sm:$0x1]
        %v1416 = vsel %vm1253, %v1339, %v1415
        %1417 = vst [vmem:[%s1250 + $0xc] sm:$0x1] %v1416
        %v1418 = vld [vmem:[%s1250 + $0x10] sm:$0xf]
        %v1419 = vsel %vm1405, %v1346, %v1418
        %1420 = vst [vmem:[%s1250 + $0x10] sm:$0xf] %v1419
        %v1421 = vld [vmem:[%s1250 + $0x14] sm:$0x1]
        %v1422 = vsel %vm1253, %v1347, %v1421
        %1423 = vst [vmem:[%s1250 + $0x14] sm:$0x1] %v1422
        %v1424 = vld [vmem:[%s1250 + $0x18] sm:$0xf]
        %v1425 = vsel %vm1405, %v1354, %v1424
        %1426 = vst [vmem:[%s1250 + $0x18] sm:$0xf] %v1425
        %v1427 = vld [vmem:[%s1250 + $0x1c] sm:$0x1]
        %v1428 = vsel %vm1253, %v1355, %v1427
        %1429 = vst [vmem:[%s1250 + $0x1c] sm:$0x1] %v1428
        %v1430 = vld [vmem:[%s1250 + $0x20] sm:$0xf]
        %v1431 = vsel %vm1405, %v1362, %v1430
        %1432 = vst [vmem:[%s1250 + $0x20] sm:$0xf] %v1431
        %v1433 = vld [vmem:[%s1250 + $0x24] sm:$0x1]
        %v1434 = vsel %vm1253, %v1363, %v1433
        %1435 = vst [vmem:[%s1250 + $0x24] sm:$0x1] %v1434
        %v1436 = vld [vmem:[%s1250 + $0x28] sm:$0xf]
        %v1437 = vsel %vm1405, %v1370, %v1436
        %1438 = vst [vmem:[%s1250 + $0x28] sm:$0xf] %v1437
        %v1439 = vld [vmem:[%s1250 + $0x2c] sm:$0x1]
        %v1440 = vsel %vm1253, %v1371, %v1439
        %1441 = vst [vmem:[%s1250 + $0x2c] sm:$0x1] %v1440
        %v1442 = vld [vmem:[%s1250 + $0x30] sm:$0xf]
        %v1443 = vsel %vm1405, %v1378, %v1442
        %1444 = vst [vmem:[%s1250 + $0x30] sm:$0xf] %v1443
        %v1445 = vld [vmem:[%s1250 + $0x34] sm:$0x1]
        %v1446 = vsel %vm1253, %v1379, %v1445
        %1447 = vst [vmem:[%s1250 + $0x34] sm:$0x1] %v1446
        %v1448 = vld [vmem:[%s1250 + $0x38] sm:$0xf]
        %v1449 = vsel %vm1405, %v1386, %v1448
        %1450 = vst [vmem:[%s1250 + $0x38] sm:$0xf] %v1449
        %v1451 = vld [vmem:[%s1250 + $0x3c] sm:$0x1]
        %v1452 = vsel %vm1253, %v1387, %v1451
        %1453 = vst [vmem:[%s1250 + $0x3c] sm:$0x1] %v1452
        %v1454 = vld [vmem:[#allocation2] sm:$0xf]
        %v1455 = vld [vmem:[#allocation2 + $0x8] sm:$0xf]
        %v1456 = vld [vmem:[#allocation2 + $0x10] sm:$0xf]
        %v1457 = vld [vmem:[#allocation2 + $0x18] sm:$0xf]
        %v1458 = vld [vmem:[#allocation2 + $0x20] sm:$0xf]
        %v1459 = vld [vmem:[#allocation2 + $0x28] sm:$0xf]
        %v1460 = vld [vmem:[#allocation2 + $0x30] sm:$0xf]
        %v1461 = vld [vmem:[#allocation2 + $0x38] sm:$0xf]
        %v1462 = vld [vmem:[#allocation2 + $0x4] sm:$0x1]
        %v1463 = vld [vmem:[#allocation2 + $0xc] sm:$0x1]
        %v1464 = vld [vmem:[#allocation2 + $0x14] sm:$0x1]
        %v1465 = vld [vmem:[#allocation2 + $0x1c] sm:$0x1]
        %v1466 = vld [vmem:[#allocation2 + $0x24] sm:$0x1]
        %v1467 = vld [vmem:[#allocation2 + $0x2c] sm:$0x1]
        %v1468 = vld [vmem:[#allocation2 + $0x34] sm:$0x1]
        %v1469 = vld [vmem:[#allocation2 + $0x3c] sm:$0x1]
        %v1471 = vshrl.u32 %v1454, 16
        %v1473 = vrot.slane %v1471, 4
        %v1474 = vshll.u32 %v1454, 16
        %v1476 = vrot.slane %v1474, 5
        %v1477 = vor.u32 %v1473, %v1476
        %v1478 = vrot.slane %v1477, 4
        %v1480 = vshll.u32 %v1462, 16
        %v1482 = vrot.slane %v1480, 5
        %v1483 = vsel %vm278, %v1478, %v1482
        %v1485 = vshrl.u32 %v1455, 16
        %v1487 = vrot.slane %v1485, 4
        %v1488 = vshll.u32 %v1455, 16
        %v1490 = vrot.slane %v1488, 5
        %v1491 = vor.u32 %v1487, %v1490
        %v1492 = vrot.slane %v1491, 4
        %v1494 = vshll.u32 %v1463, 16
        %v1496 = vrot.slane %v1494, 5
        %v1497 = vsel %vm278, %v1492, %v1496
        %v1499 = vshrl.u32 %v1456, 16
        %v1501 = vrot.slane %v1499, 4
        %v1502 = vshll.u32 %v1456, 16
        %v1504 = vrot.slane %v1502, 5
        %v1505 = vor.u32 %v1501, %v1504
        %v1506 = vrot.slane %v1505, 4
        %v1508 = vshll.u32 %v1464, 16
        %v1510 = vrot.slane %v1508, 5
        %v1511 = vsel %vm278, %v1506, %v1510
        %v1513 = vshrl.u32 %v1457, 16
        %v1515 = vrot.slane %v1513, 4
        %v1516 = vshll.u32 %v1457, 16
        %v1518 = vrot.slane %v1516, 5
        %v1519 = vor.u32 %v1515, %v1518
        %v1520 = vrot.slane %v1519, 4
        %v1522 = vshll.u32 %v1465, 16
        %v1524 = vrot.slane %v1522, 5
        %v1525 = vsel %vm278, %v1520, %v1524
        %v1527 = vshrl.u32 %v1458, 16
        %v1529 = vrot.slane %v1527, 4
        %v1530 = vshll.u32 %v1458, 16
        %v1532 = vrot.slane %v1530, 5
        %v1533 = vor.u32 %v1529, %v1532
        %v1534 = vrot.slane %v1533, 4
        %v1536 = vshll.u32 %v1466, 16
        %v1538 = vrot.slane %v1536, 5
        %v1539 = vsel %vm278, %v1534, %v1538
        %v1541 = vshrl.u32 %v1459, 16
        %v1543 = vrot.slane %v1541, 4
        %v1544 = vshll.u32 %v1459, 16
        %v1546 = vrot.slane %v1544, 5
        %v1547 = vor.u32 %v1543, %v1546
        %v1548 = vrot.slane %v1547, 4
        %v1550 = vshll.u32 %v1467, 16
        %v1552 = vrot.slane %v1550, 5
        %v1553 = vsel %vm278, %v1548, %v1552
        %v1555 = vshrl.u32 %v1460, 16
        %v1557 = vrot.slane %v1555, 4
        %v1558 = vshll.u32 %v1460, 16
        %v1560 = vrot.slane %v1558, 5
        %v1561 = vor.u32 %v1557, %v1560
        %v1562 = vrot.slane %v1561, 4
        %v1564 = vshll.u32 %v1468, 16
        %v1566 = vrot.slane %v1564, 5
        %v1567 = vsel %vm278, %v1562, %v1566
        %v1569 = vshrl.u32 %v1461, 16
        %v1571 = vrot.slane %v1569, 4
        %v1572 = vshll.u32 %v1461, 16
        %v1574 = vrot.slane %v1572, 5
        %v1575 = vor.u32 %v1571, %v1574
        %v1576 = vrot.slane %v1575, 4
        %v1578 = vshll.u32 %v1469, 16
        %v1580 = vrot.slane %v1578, 5
        %v1581 = vsel %vm278, %v1576, %v1580
        %v1582 = vld [vmem:[#allocation2] sm:$0xe]
        %v1583 = vld [vmem:[#allocation2 + $0x8] sm:$0xe]
        %v1584 = vld [vmem:[#allocation2 + $0x10] sm:$0xe]
        %v1585 = vld [vmem:[#allocation2 + $0x18] sm:$0xe]
        %v1586 = vld [vmem:[#allocation2 + $0x20] sm:$0xe]
        %v1587 = vld [vmem:[#allocation2 + $0x28] sm:$0xe]
        %v1588 = vld [vmem:[#allocation2 + $0x30] sm:$0xe]
        %v1589 = vld [vmem:[#allocation2 + $0x38] sm:$0xe]
        %vm1606 = vcmask 1042432
        %vm1607 = vcmask 1046532
        %vm1608 = vmor %vm1606, %vm1607
        %v1609 = vrot.slane %v1582, 5
        %v1610 = vrot.slane %v1609, 4
        %v1611 = vrot.slane %v1462, 5
        %v1612 = vsel %vm1608, %v1610, %v1611
        %v1613 = vrot.slane %v1583, 5
        %v1614 = vrot.slane %v1613, 4
        %v1615 = vrot.slane %v1463, 5
        %v1616 = vsel %vm1608, %v1614, %v1615
        %v1617 = vrot.slane %v1584, 5
        %v1618 = vrot.slane %v1617, 4
        %v1619 = vrot.slane %v1464, 5
        %v1620 = vsel %vm1608, %v1618, %v1619
        %v1621 = vrot.slane %v1585, 5
        %v1622 = vrot.slane %v1621, 4
        %v1623 = vrot.slane %v1465, 5
        %v1624 = vsel %vm1608, %v1622, %v1623
        %v1625 = vrot.slane %v1586, 5
        %v1626 = vrot.slane %v1625, 4
        %v1627 = vrot.slane %v1466, 5
        %v1628 = vsel %vm1608, %v1626, %v1627
        %v1629 = vrot.slane %v1587, 5
        %v1630 = vrot.slane %v1629, 4
        %v1631 = vrot.slane %v1467, 5
        %v1632 = vsel %vm1608, %v1630, %v1631
        %v1633 = vrot.slane %v1588, 5
        %v1634 = vrot.slane %v1633, 4
        %v1635 = vrot.slane %v1468, 5
        %v1636 = vsel %vm1608, %v1634, %v1635
        %v1637 = vrot.slane %v1589, 5
        %v1638 = vrot.slane %v1637, 4
        %v1639 = vrot.slane %v1469, 5
        %v1640 = vsel %vm1608, %v1638, %v1639
        %v1641 = vld [vmem:[%s1250] sm:$0xf]
        %v1642 = vld [vmem:[%s1250 + $0x8] sm:$0xf]
        %v1643 = vld [vmem:[%s1250 + $0x10] sm:$0xf]
        %v1644 = vld [vmem:[%s1250 + $0x18] sm:$0xf]
        %v1645 = vld [vmem:[%s1250 + $0x20] sm:$0xf]
        %v1646 = vld [vmem:[%s1250 + $0x28] sm:$0xf]
        %v1647 = vld [vmem:[%s1250 + $0x30] sm:$0xf]
        %v1648 = vld [vmem:[%s1250 + $0x38] sm:$0xf]
        %v1649 = vld [vmem:[%s1250 + $0x4] sm:$0x1]
        %v1650 = vld [vmem:[%s1250 + $0xc] sm:$0x1]
        %v1651 = vld [vmem:[%s1250 + $0x14] sm:$0x1]
        %v1652 = vld [vmem:[%s1250 + $0x1c] sm:$0x1]
        %v1653 = vld [vmem:[%s1250 + $0x24] sm:$0x1]
        %v1654 = vld [vmem:[%s1250 + $0x2c] sm:$0x1]
        %v1655 = vld [vmem:[%s1250 + $0x34] sm:$0x1]
        %v1656 = vld [vmem:[%s1250 + $0x3c] sm:$0x1]
        %v1658 = vshrl.u32 %v1641, 16
        %v1660 = vrot.slane %v1658, 4
        %v1661 = vshll.u32 %v1641, 16
        %v1663 = vrot.slane %v1661, 5
        %v1664 = vor.u32 %v1660, %v1663
        %v1665 = vrot.slane %v1664, 4
        %v1667 = vshll.u32 %v1649, 16
        %v1669 = vrot.slane %v1667, 5
        %v1670 = vsel %vm278, %v1665, %v1669
        %v1672 = vshrl.u32 %v1642, 16
        %v1674 = vrot.slane %v1672, 4
        %v1675 = vshll.u32 %v1642, 16
        %v1677 = vrot.slane %v1675, 5
        %v1678 = vor.u32 %v1674, %v1677
        %v1679 = vrot.slane %v1678, 4
        %v1681 = vshll.u32 %v1650, 16
        %v1683 = vrot.slane %v1681, 5
        %v1684 = vsel %vm278, %v1679, %v1683
        %v1686 = vshrl.u32 %v1643, 16
        %v1688 = vrot.slane %v1686, 4
        %v1689 = vshll.u32 %v1643, 16
        %v1691 = vrot.slane %v1689, 5
        %v1692 = vor.u32 %v1688, %v1691
        %v1693 = vrot.slane %v1692, 4
        %v1695 = vshll.u32 %v1651, 16
        %v1697 = vrot.slane %v1695, 5
        %v1698 = vsel %vm278, %v1693, %v1697
        %v1700 = vshrl.u32 %v1644, 16
        %v1702 = vrot.slane %v1700, 4
        %v1703 = vshll.u32 %v1644, 16
        %v1705 = vrot.slane %v1703, 5
        %v1706 = vor.u32 %v1702, %v1705
        %v1707 = vrot.slane %v1706, 4
        %v1709 = vshll.u32 %v1652, 16
        %v1711 = vrot.slane %v1709, 5
        %v1712 = vsel %vm278, %v1707, %v1711
        %v1714 = vshrl.u32 %v1645, 16
        %v1716 = vrot.slane %v1714, 4
        %v1717 = vshll.u32 %v1645, 16
        %v1719 = vrot.slane %v1717, 5
        %v1720 = vor.u32 %v1716, %v1719
        %v1721 = vrot.slane %v1720, 4
        %v1723 = vshll.u32 %v1653, 16
        %v1725 = vrot.slane %v1723, 5
        %v1726 = vsel %vm278, %v1721, %v1725
        %v1728 = vshrl.u32 %v1646, 16
        %v1730 = vrot.slane %v1728, 4
        %v1731 = vshll.u32 %v1646, 16
        %v1733 = vrot.slane %v1731, 5
        %v1734 = vor.u32 %v1730, %v1733
        %v1735 = vrot.slane %v1734, 4
        %v1737 = vshll.u32 %v1654, 16
        %v1739 = vrot.slane %v1737, 5
        %v1740 = vsel %vm278, %v1735, %v1739
        %v1742 = vshrl.u32 %v1647, 16
        %v1744 = vrot.slane %v1742, 4
        %v1745 = vshll.u32 %v1647, 16
        %v1747 = vrot.slane %v1745, 5
        %v1748 = vor.u32 %v1744, %v1747
        %v1749 = vrot.slane %v1748, 4
        %v1751 = vshll.u32 %v1655, 16
        %v1753 = vrot.slane %v1751, 5
        %v1754 = vsel %vm278, %v1749, %v1753
        %v1756 = vshrl.u32 %v1648, 16
        %v1758 = vrot.slane %v1756, 4
        %v1759 = vshll.u32 %v1648, 16
        %v1761 = vrot.slane %v1759, 5
        %v1762 = vor.u32 %v1758, %v1761
        %v1763 = vrot.slane %v1762, 4
        %v1765 = vshll.u32 %v1656, 16
        %v1767 = vrot.slane %v1765, 5
        %v1768 = vsel %vm278, %v1763, %v1767
        %v1769 = vld [vmem:[%s1250] sm:$0xe]
        %v1770 = vld [vmem:[%s1250 + $0x8] sm:$0xe]
        %v1771 = vld [vmem:[%s1250 + $0x10] sm:$0xe]
        %v1772 = vld [vmem:[%s1250 + $0x18] sm:$0xe]
        %v1773 = vld [vmem:[%s1250 + $0x20] sm:$0xe]
        %v1774 = vld [vmem:[%s1250 + $0x28] sm:$0xe]
        %v1775 = vld [vmem:[%s1250 + $0x30] sm:$0xe]
        %v1776 = vld [vmem:[%s1250 + $0x38] sm:$0xe]
        %v1793 = vrot.slane %v1769, 5
        %v1794 = vrot.slane %v1793, 4
        %v1795 = vrot.slane %v1649, 5
        %v1796 = vsel %vm1608, %v1794, %v1795
        %v1797 = vrot.slane %v1770, 5
        %v1798 = vrot.slane %v1797, 4
        %v1799 = vrot.slane %v1650, 5
        %v1800 = vsel %vm1608, %v1798, %v1799
        %v1801 = vrot.slane %v1771, 5
        %v1802 = vrot.slane %v1801, 4
        %v1803 = vrot.slane %v1651, 5
        %v1804 = vsel %vm1608, %v1802, %v1803
        %v1805 = vrot.slane %v1772, 5
        %v1806 = vrot.slane %v1805, 4
        %v1807 = vrot.slane %v1652, 5
        %v1808 = vsel %vm1608, %v1806, %v1807
        %v1809 = vrot.slane %v1773, 5
        %v1810 = vrot.slane %v1809, 4
        %v1811 = vrot.slane %v1653, 5
        %v1812 = vsel %vm1608, %v1810, %v1811
        %v1813 = vrot.slane %v1774, 5
        %v1814 = vrot.slane %v1813, 4
        %v1815 = vrot.slane %v1654, 5
        %v1816 = vsel %vm1608, %v1814, %v1815
        %v1817 = vrot.slane %v1775, 5
        %v1818 = vrot.slane %v1817, 4
        %v1819 = vrot.slane %v1655, 5
        %v1820 = vsel %vm1608, %v1818, %v1819
        %v1821 = vrot.slane %v1776, 5
        %v1822 = vrot.slane %v1821, 4
        %v1823 = vrot.slane %v1656, 5
        %v1824 = vsel %vm1608, %v1822, %v1823
        %s1825 = scalar_lea.vmem [#allocation2], 16
        %v1826 = vld [vmem:[%s1825] sm:$0xf]
        %v1827 = vld [vmem:[%s1825 + $0x8] sm:$0xf]
        %v1828 = vld [vmem:[%s1825 + $0x10] sm:$0xf]
        %v1829 = vld [vmem:[%s1825 + $0x18] sm:$0xf]
        %v1830 = vld [vmem:[%s1825 + $0x20] sm:$0xf]
        %v1831 = vld [vmem:[%s1825 + $0x28] sm:$0xf]
        %v1832 = vld [vmem:[%s1825 + $0x30] sm:$0xf]
        %v1833 = vld [vmem:[%s1825 + $0x38] sm:$0xf]
        %v1834 = vld [vmem:[%s1825 + $0x4] sm:$0x1]
        %v1835 = vld [vmem:[%s1825 + $0xc] sm:$0x1]
        %v1836 = vld [vmem:[%s1825 + $0x14] sm:$0x1]
        %v1837 = vld [vmem:[%s1825 + $0x1c] sm:$0x1]
        %v1838 = vld [vmem:[%s1825 + $0x24] sm:$0x1]
        %v1839 = vld [vmem:[%s1825 + $0x2c] sm:$0x1]
        %v1840 = vld [vmem:[%s1825 + $0x34] sm:$0x1]
        %v1841 = vld [vmem:[%s1825 + $0x3c] sm:$0x1]
        %v1843 = vshrl.u32 %v1826, 16
        %v1845 = vrot.slane %v1843, 4
        %v1846 = vshll.u32 %v1826, 16
        %v1848 = vrot.slane %v1846, 5
        %v1849 = vor.u32 %v1845, %v1848
        %v1850 = vrot.slane %v1849, 4
        %v1852 = vshll.u32 %v1834, 16
        %v1854 = vrot.slane %v1852, 5
        %v1855 = vsel %vm278, %v1850, %v1854
        %v1857 = vshrl.u32 %v1827, 16
        %v1859 = vrot.slane %v1857, 4
        %v1860 = vshll.u32 %v1827, 16
        %v1862 = vrot.slane %v1860, 5
        %v1863 = vor.u32 %v1859, %v1862
        %v1864 = vrot.slane %v1863, 4
        %v1866 = vshll.u32 %v1835, 16
        %v1868 = vrot.slane %v1866, 5
        %v1869 = vsel %vm278, %v1864, %v1868
        %v1871 = vshrl.u32 %v1828, 16
        %v1873 = vrot.slane %v1871, 4
        %v1874 = vshll.u32 %v1828, 16
        %v1876 = vrot.slane %v1874, 5
        %v1877 = vor.u32 %v1873, %v1876
        %v1878 = vrot.slane %v1877, 4
        %v1880 = vshll.u32 %v1836, 16
        %v1882 = vrot.slane %v1880, 5
        %v1883 = vsel %vm278, %v1878, %v1882
        %v1885 = vshrl.u32 %v1829, 16
        %v1887 = vrot.slane %v1885, 4
        %v1888 = vshll.u32 %v1829, 16
        %v1890 = vrot.slane %v1888, 5
        %v1891 = vor.u32 %v1887, %v1890
        %v1892 = vrot.slane %v1891, 4
        %v1894 = vshll.u32 %v1837, 16
        %v1896 = vrot.slane %v1894, 5
        %v1897 = vsel %vm278, %v1892, %v1896
        %v1899 = vshrl.u32 %v1830, 16
        %v1901 = vrot.slane %v1899, 4
        %v1902 = vshll.u32 %v1830, 16
        %v1904 = vrot.slane %v1902, 5
        %v1905 = vor.u32 %v1901, %v1904
        %v1906 = vrot.slane %v1905, 4
        %v1908 = vshll.u32 %v1838, 16
        %v1910 = vrot.slane %v1908, 5
        %v1911 = vsel %vm278, %v1906, %v1910
        %v1913 = vshrl.u32 %v1831, 16
        %v1915 = vrot.slane %v1913, 4
        %v1916 = vshll.u32 %v1831, 16
        %v1918 = vrot.slane %v1916, 5
        %v1919 = vor.u32 %v1915, %v1918
        %v1920 = vrot.slane %v1919, 4
        %v1922 = vshll.u32 %v1839, 16
        %v1924 = vrot.slane %v1922, 5
        %v1925 = vsel %vm278, %v1920, %v1924
        %v1927 = vshrl.u32 %v1832, 16
        %v1929 = vrot.slane %v1927, 4
        %v1930 = vshll.u32 %v1832, 16
        %v1932 = vrot.slane %v1930, 5
        %v1933 = vor.u32 %v1929, %v1932
        %v1934 = vrot.slane %v1933, 4
        %v1936 = vshll.u32 %v1840, 16
        %v1938 = vrot.slane %v1936, 5
        %v1939 = vsel %vm278, %v1934, %v1938
        %v1941 = vshrl.u32 %v1833, 16
        %v1943 = vrot.slane %v1941, 4
        %v1944 = vshll.u32 %v1833, 16
        %v1946 = vrot.slane %v1944, 5
        %v1947 = vor.u32 %v1943, %v1946
        %v1948 = vrot.slane %v1947, 4
        %v1950 = vshll.u32 %v1841, 16
        %v1952 = vrot.slane %v1950, 5
        %v1953 = vsel %vm278, %v1948, %v1952
        %v1954 = vld [vmem:[%s1825] sm:$0xe]
        %v1955 = vld [vmem:[%s1825 + $0x8] sm:$0xe]
        %v1956 = vld [vmem:[%s1825 + $0x10] sm:$0xe]
        %v1957 = vld [vmem:[%s1825 + $0x18] sm:$0xe]
        %v1958 = vld [vmem:[%s1825 + $0x20] sm:$0xe]
        %v1959 = vld [vmem:[%s1825 + $0x28] sm:$0xe]
        %v1960 = vld [vmem:[%s1825 + $0x30] sm:$0xe]
        %v1961 = vld [vmem:[%s1825 + $0x38] sm:$0xe]
        %v1978 = vrot.slane %v1954, 5
        %v1979 = vrot.slane %v1978, 4
        %v1980 = vrot.slane %v1834, 5
        %v1981 = vsel %vm1608, %v1979, %v1980
        %v1982 = vrot.slane %v1955, 5
        %v1983 = vrot.slane %v1982, 4
        %v1984 = vrot.slane %v1835, 5
        %v1985 = vsel %vm1608, %v1983, %v1984
        %v1986 = vrot.slane %v1956, 5
        %v1987 = vrot.slane %v1986, 4
        %v1988 = vrot.slane %v1836, 5
        %v1989 = vsel %vm1608, %v1987, %v1988
        %v1990 = vrot.slane %v1957, 5
        %v1991 = vrot.slane %v1990, 4
        %v1992 = vrot.slane %v1837, 5
        %v1993 = vsel %vm1608, %v1991, %v1992
        %v1994 = vrot.slane %v1958, 5
        %v1995 = vrot.slane %v1994, 4
        %v1996 = vrot.slane %v1838, 5
        %v1997 = vsel %vm1608, %v1995, %v1996
        %v1998 = vrot.slane %v1959, 5
        %v1999 = vrot.slane %v1998, 4
        %v2000 = vrot.slane %v1839, 5
        %v2001 = vsel %vm1608, %v1999, %v2000
        %v2002 = vrot.slane %v1960, 5
        %v2003 = vrot.slane %v2002, 4
        %v2004 = vrot.slane %v1840, 5
        %v2005 = vsel %vm1608, %v2003, %v2004
        %v2006 = vrot.slane %v1961, 5
        %v2007 = vrot.slane %v2006, 4
        %v2008 = vrot.slane %v1841, 5
        %v2009 = vsel %vm1608, %v2007, %v2008
        %v2018 = vunpack.c.l.b16 %v1454
        %v2019 = vunpack.c.l.b16 %v1455
        %v2020 = vunpack.c.l.b16 %v1456
        %v2021 = vunpack.c.l.b16 %v1457
        %v2022 = vunpack.c.l.b16 %v1458
        %v2023 = vunpack.c.l.b16 %v1459
        %v2024 = vunpack.c.l.b16 %v1460
        %v2025 = vunpack.c.l.b16 %v1461
        %v2026 = vpack.c.b16 %v2019, %v2018
        %v2027 = vpack.c.b16 %v2021, %v2020
        %v2028 = vpack.c.b16 %v2023, %v2022
        %v2029 = vpack.c.b16 %v2025, %v2024
        %v2030 = vunpack.c.l.b16 %v1483
        %v2031 = vunpack.c.l.b16 %v1497
        %v2032 = vunpack.c.l.b16 %v1511
        %v2033 = vunpack.c.l.b16 %v1525
        %v2034 = vunpack.c.l.b16 %v1539
        %v2035 = vunpack.c.l.b16 %v1553
        %v2036 = vunpack.c.l.b16 %v1567
        %v2037 = vunpack.c.l.b16 %v1581
        %v2038 = vpack.c.b16 %v2031, %v2030
        %v2039 = vpack.c.b16 %v2033, %v2032
        %v2040 = vpack.c.b16 %v2035, %v2034
        %v2041 = vpack.c.b16 %v2037, %v2036
        %2042 = vrot.lane.b32.xlu0 %v2038, 64
        %v2043 = vpop.permute.xlu0 %2042
        %2044 = vrot.lane.b32.xlu0 %v2039, 64
        %v2045 = vpop.permute.xlu0 %2044
        %2046 = vrot.lane.b32.xlu0 %v2040, 64
        %v2047 = vpop.permute.xlu0 %2046
        %2048 = vrot.lane.b32.xlu0 %v2041, 64
        %v2049 = vpop.permute.xlu0 %2048
        %v2050 = vunpack.c.l.b16 %v1612
        %v2051 = vunpack.c.l.b16 %v1616
        %v2052 = vunpack.c.l.b16 %v1620
        %v2053 = vunpack.c.l.b16 %v1624
        %v2054 = vunpack.c.l.b16 %v1628
        %v2055 = vunpack.c.l.b16 %v1632
        %v2056 = vunpack.c.l.b16 %v1636
        %v2057 = vunpack.c.l.b16 %v1640
        %v2058 = vpack.c.b16 %v2051, %v2050
        %v2059 = vpack.c.b16 %v2053, %v2052
        %v2060 = vpack.c.b16 %v2055, %v2054
        %v2061 = vpack.c.b16 %v2057, %v2056
        %v2070 = vunpack.c.l.b16 %v1641
        %v2071 = vunpack.c.l.b16 %v1642
        %v2072 = vunpack.c.l.b16 %v1643
        %v2073 = vunpack.c.l.b16 %v1644
        %v2074 = vunpack.c.l.b16 %v1645
        %v2075 = vunpack.c.l.b16 %v1646
        %v2076 = vunpack.c.l.b16 %v1647
        %v2077 = vunpack.c.l.b16 %v1648
        %v2078 = vpack.c.b16 %v2071, %v2070
        %v2079 = vpack.c.b16 %v2073, %v2072
        %v2080 = vpack.c.b16 %v2075, %v2074
        %v2081 = vpack.c.b16 %v2077, %v2076
        %2082 = vrot.lane.b32.xlu0 %v2078, 64
        %v2083 = vpop.permute.xlu0 %2082
        %2084 = vrot.lane.b32.xlu0 %v2079, 64
        %v2085 = vpop.permute.xlu0 %2084
        %2086 = vrot.lane.b32.xlu0 %v2080, 64
        %v2087 = vpop.permute.xlu0 %2086
        %2088 = vrot.lane.b32.xlu0 %v2081, 64
        %v2089 = vpop.permute.xlu0 %2088
        %v2090 = vunpack.c.l.b16 %v1670
        %v2091 = vunpack.c.l.b16 %v1684
        %v2092 = vunpack.c.l.b16 %v1698
        %v2093 = vunpack.c.l.b16 %v1712
        %v2094 = vunpack.c.l.b16 %v1726
        %v2095 = vunpack.c.l.b16 %v1740
        %v2096 = vunpack.c.l.b16 %v1754
        %v2097 = vunpack.c.l.b16 %v1768
        %v2098 = vpack.c.b16 %v2091, %v2090
        %v2099 = vpack.c.b16 %v2093, %v2092
        %v2100 = vpack.c.b16 %v2095, %v2094
        %v2101 = vpack.c.b16 %v2097, %v2096
        %v2102 = vunpack.c.l.b16 %v1796
        %v2103 = vunpack.c.l.b16 %v1800
        %v2104 = vunpack.c.l.b16 %v1804
        %v2105 = vunpack.c.l.b16 %v1808
        %v2106 = vunpack.c.l.b16 %v1812
        %v2107 = vunpack.c.l.b16 %v1816
        %v2108 = vunpack.c.l.b16 %v1820
        %v2109 = vunpack.c.l.b16 %v1824
        %v2110 = vpack.c.b16 %v2103, %v2102
        %v2111 = vpack.c.b16 %v2105, %v2104
        %v2112 = vpack.c.b16 %v2107, %v2106
        %v2113 = vpack.c.b16 %v2109, %v2108
        %2114 = vrot.lane.b32.xlu0 %v2110, 64
        %v2115 = vpop.permute.xlu0 %2114
        %2116 = vrot.lane.b32.xlu0 %v2111, 64
        %v2117 = vpop.permute.xlu0 %2116
        %2118 = vrot.lane.b32.xlu0 %v2112, 64
        %v2119 = vpop.permute.xlu0 %2118
        %2120 = vrot.lane.b32.xlu0 %v2113, 64
        %v2121 = vpop.permute.xlu0 %2120
        %v2130 = vunpack.c.l.b16 %v1826
        %v2131 = vunpack.c.l.b16 %v1827
        %v2132 = vunpack.c.l.b16 %v1828
        %v2133 = vunpack.c.l.b16 %v1829
        %v2134 = vunpack.c.l.b16 %v1830
        %v2135 = vunpack.c.l.b16 %v1831
        %v2136 = vunpack.c.l.b16 %v1832
        %v2137 = vunpack.c.l.b16 %v1833
        %v2138 = vpack.c.b16 %v2131, %v2130
        %v2139 = vpack.c.b16 %v2133, %v2132
        %v2140 = vpack.c.b16 %v2135, %v2134
        %v2141 = vpack.c.b16 %v2137, %v2136
        %v2142 = vunpack.c.l.b16 %v1855
        %v2143 = vunpack.c.l.b16 %v1869
        %v2144 = vunpack.c.l.b16 %v1883
        %v2145 = vunpack.c.l.b16 %v1897
        %v2146 = vunpack.c.l.b16 %v1911
        %v2147 = vunpack.c.l.b16 %v1925
        %v2148 = vunpack.c.l.b16 %v1939
        %v2149 = vunpack.c.l.b16 %v1953
        %v2150 = vpack.c.b16 %v2143, %v2142
        %v2151 = vpack.c.b16 %v2145, %v2144
        %v2152 = vpack.c.b16 %v2147, %v2146
        %v2153 = vpack.c.b16 %v2149, %v2148
        %2154 = vrot.lane.b32.xlu0 %v2150, 64
        %v2155 = vpop.permute.xlu0 %2154
        %2156 = vrot.lane.b32.xlu0 %v2151, 64
        %v2157 = vpop.permute.xlu0 %2156
        %2158 = vrot.lane.b32.xlu0 %v2152, 64
        %v2159 = vpop.permute.xlu0 %2158
        %2160 = vrot.lane.b32.xlu0 %v2153, 64
        %v2161 = vpop.permute.xlu0 %2160
        %v2162 = vunpack.c.l.b16 %v1981
        %v2163 = vunpack.c.l.b16 %v1985
        %v2164 = vunpack.c.l.b16 %v1989
        %v2165 = vunpack.c.l.b16 %v1993
        %v2166 = vunpack.c.l.b16 %v1997
        %v2167 = vunpack.c.l.b16 %v2001
        %v2168 = vunpack.c.l.b16 %v2005
        %v2169 = vunpack.c.l.b16 %v2009
        %v2170 = vpack.c.b16 %v2163, %v2162
        %v2171 = vpack.c.b16 %v2165, %v2164
        %v2172 = vpack.c.b16 %v2167, %v2166
        %v2173 = vpack.c.b16 %v2169, %v2168
        %v2176 = vsel %vm884, %v2026, %v2043
        %v2180 = vsel %vm884, %v2027, %v2045
        %v2184 = vsel %vm884, %v2028, %v2047
        %v2188 = vsel %vm884, %v2029, %v2049
        %v2192 = vsel %vm884, %v2058, %v2083
        %v2196 = vsel %vm884, %v2059, %v2085
        %v2200 = vsel %vm884, %v2060, %v2087
        %v2204 = vsel %vm884, %v2061, %v2089
        %v2208 = vsel %vm884, %v2098, %v2115
        %v2212 = vsel %vm884, %v2099, %v2117
        %v2216 = vsel %vm884, %v2100, %v2119
        %v2220 = vsel %vm884, %v2101, %v2121
        %v2224 = vsel %vm884, %v2138, %v2155
        %v2228 = vsel %vm884, %v2139, %v2157
        %v2232 = vsel %vm884, %v2140, %v2159
        %v2236 = vsel %vm884, %v2141, %v2161
        %v2238 = vld [vmem:[%s3] sm:$0xf]
        %v2239 = vld [vmem:[%s3 + $0x4] sm:$0xf]
        %v2240 = vld [vmem:[%s3 + $0x8] sm:$0xf]
        %v2241 = vld [vmem:[%s3 + $0xc] sm:$0xf]
        %v2242 = vld [vmem:[%s3 + $0x10] sm:$0xf]
        %v2243 = vld [vmem:[%s3 + $0x14] sm:$0xf]
        %v2244 = vld [vmem:[%s3 + $0x18] sm:$0xf]
        %v2245 = vld [vmem:[%s3 + $0x1c] sm:$0xf]
        %v2246 = vld [vmem:[%s3 + $0x20] sm:$0xf]
        %v2247 = vld [vmem:[%s3 + $0x24] sm:$0xf]
        %v2248 = vld [vmem:[%s3 + $0x28] sm:$0xf]
        %v2249 = vld [vmem:[%s3 + $0x2c] sm:$0xf]
        %v2250 = vld [vmem:[%s3 + $0x30] sm:$0xf]
        %v2251 = vld [vmem:[%s3 + $0x34] sm:$0xf]
        %v2252 = vld [vmem:[%s3 + $0x38] sm:$0xf]
        %v2253 = vld [vmem:[%s3 + $0x3c] sm:$0xf]
        %v2254 = vld [vmem:[%s3 + $0x40] sm:$0xf]
        %v2255 = vld [vmem:[%s3 + $0x44] sm:$0xf]
        %v2256 = vld [vmem:[%s3 + $0x48] sm:$0xf]
        %v2257 = vld [vmem:[%s3 + $0x4c] sm:$0xf]
        %v2258 = vld [vmem:[%s3 + $0x50] sm:$0xf]
        %v2259 = vld [vmem:[%s3 + $0x54] sm:$0xf]
        %v2260 = vld [vmem:[%s3 + $0x58] sm:$0xf]
        %v2261 = vld [vmem:[%s3 + $0x5c] sm:$0xf]
        %v2262 = vld [vmem:[%s3 + $0x60] sm:$0xf]
        %v2263 = vld [vmem:[%s3 + $0x64] sm:$0xf]
        %v2264 = vld [vmem:[%s3 + $0x68] sm:$0xf]
        %v2265 = vld [vmem:[%s3 + $0x6c] sm:$0xf]
        %v2266 = vld [vmem:[%s3 + $0x70] sm:$0xf]
        %v2267 = vld [vmem:[%s3 + $0x74] sm:$0xf]
        %v2268 = vld [vmem:[%s3 + $0x78] sm:$0xf]
        %v2269 = vld [vmem:[%s3 + $0x7c] sm:$0xf]
        %v2270 = vld [vmem:[%s3 + $0x80] sm:$0xf]
        %v2271 = vld [vmem:[%s3 + $0x84] sm:$0xf]
        %v2272 = vld [vmem:[%s3 + $0x88] sm:$0xf]
        %v2273 = vld [vmem:[%s3 + $0x8c] sm:$0xf]
        %v2274 = vld [vmem:[%s3 + $0x90] sm:$0xf]
        %v2275 = vld [vmem:[%s3 + $0x94] sm:$0xf]
        %v2276 = vld [vmem:[%s3 + $0x98] sm:$0xf]
        %v2277 = vld [vmem:[%s3 + $0x9c] sm:$0xf]
        %v2278 = vld [vmem:[%s3 + $0xa0] sm:$0xf]
        %v2279 = vld [vmem:[%s3 + $0xa4] sm:$0xf]
        %v2280 = vld [vmem:[%s3 + $0xa8] sm:$0xf]
        %v2281 = vld [vmem:[%s3 + $0xac] sm:$0xf]
        %v2282 = vld [vmem:[%s3 + $0xb0] sm:$0xf]
        %v2283 = vld [vmem:[%s3 + $0xb4] sm:$0xf]
        %v2284 = vld [vmem:[%s3 + $0xb8] sm:$0xf]
        %v2285 = vld [vmem:[%s3 + $0xbc] sm:$0xf]
        %v2286 = vld [vmem:[%s3 + $0xc0] sm:$0xf]
        %v2287 = vld [vmem:[%s3 + $0xc4] sm:$0xf]
        %v2288 = vld [vmem:[%s3 + $0xc8] sm:$0xf]
        %v2289 = vld [vmem:[%s3 + $0xcc] sm:$0xf]
        %v2290 = vld [vmem:[%s3 + $0xd0] sm:$0xf]
        %v2291 = vld [vmem:[%s3 + $0xd4] sm:$0xf]
        %v2292 = vld [vmem:[%s3 + $0xd8] sm:$0xf]
        %v2293 = vld [vmem:[%s3 + $0xdc] sm:$0xf]
        %v2294 = vld [vmem:[%s3 + $0xe0] sm:$0xf]
        %v2295 = vld [vmem:[%s3 + $0xe4] sm:$0xf]
        %v2296 = vld [vmem:[%s3 + $0xe8] sm:$0xf]
        %v2297 = vld [vmem:[%s3 + $0xec] sm:$0xf]
        %v2298 = vld [vmem:[%s3 + $0xf0] sm:$0xf]
        %v2299 = vld [vmem:[%s3 + $0xf4] sm:$0xf]
        %v2300 = vld [vmem:[%s3 + $0xf8] sm:$0xf]
        %v2301 = vld [vmem:[%s3 + $0xfc] sm:$0xf]
        %v2302 = vld [vmem:[%s3 + $0x100] sm:$0xf]
        %v2303 = vld [vmem:[%s3 + $0x104] sm:$0xf]
        %v2304 = vld [vmem:[%s3 + $0x108] sm:$0xf]
        %v2305 = vld [vmem:[%s3 + $0x10c] sm:$0xf]
        %v2306 = vld [vmem:[%s3 + $0x110] sm:$0xf]
        %v2307 = vld [vmem:[%s3 + $0x114] sm:$0xf]
        %v2308 = vld [vmem:[%s3 + $0x118] sm:$0xf]
        %v2309 = vld [vmem:[%s3 + $0x11c] sm:$0xf]
        %v2310 = vld [vmem:[%s4] sm:$0x1]
        %v2312 = vlaneseq
        %v2313 = vshrl.u32 %v2312, 7
        %v2314 = vsub.s32 0, %v2313
        %v2315 = vrot.slane %v2310, %v2314
        %v2389 = vunpack.c.l.b16 %v2238
        %v2390 = vunpack.c.l.b16 %v2239
        %v2391 = vunpack.c.l.b16 %v2240
        %v2392 = vunpack.c.l.b16 %v2241
        %v2393 = vunpack.c.l.b16 %v2242
        %v2394 = vunpack.c.l.b16 %v2243
        %v2395 = vunpack.c.l.b16 %v2244
        %v2396 = vunpack.c.l.b16 %v2245
        %v2397 = vunpack.c.l.b16 %v2246
        %v2398 = vunpack.c.l.b16 %v2247
        %v2399 = vunpack.c.l.b16 %v2248
        %v2400 = vunpack.c.l.b16 %v2249
        %v2401 = vunpack.c.l.b16 %v2250
        %v2402 = vunpack.c.l.b16 %v2251
        %v2403 = vunpack.c.l.b16 %v2252
        %v2404 = vunpack.c.l.b16 %v2253
        %v2405 = vunpack.c.l.b16 %v2254
        %v2406 = vunpack.c.l.b16 %v2255
        %v2407 = vunpack.c.l.b16 %v2256
        %v2408 = vunpack.c.l.b16 %v2257
        %v2409 = vunpack.c.l.b16 %v2258
        %v2410 = vunpack.c.l.b16 %v2259
        %v2411 = vunpack.c.l.b16 %v2260
        %v2412 = vunpack.c.l.b16 %v2261
        %v2413 = vunpack.c.l.b16 %v2262
        %v2414 = vunpack.c.l.b16 %v2263
        %v2415 = vunpack.c.l.b16 %v2264
        %v2416 = vunpack.c.l.b16 %v2265
        %v2417 = vunpack.c.l.b16 %v2266
        %v2418 = vunpack.c.l.b16 %v2267
        %v2419 = vunpack.c.l.b16 %v2268
        %v2420 = vunpack.c.l.b16 %v2269
        %v2421 = vunpack.c.l.b16 %v2270
        %v2422 = vunpack.c.l.b16 %v2271
        %v2423 = vunpack.c.l.b16 %v2272
        %v2424 = vunpack.c.l.b16 %v2273
        %v2425 = vunpack.c.l.b16 %v2274
        %v2426 = vunpack.c.l.b16 %v2275
        %v2427 = vunpack.c.l.b16 %v2276
        %v2428 = vunpack.c.l.b16 %v2277
        %v2429 = vunpack.c.l.b16 %v2278
        %v2430 = vunpack.c.l.b16 %v2279
        %v2431 = vunpack.c.l.b16 %v2280
        %v2432 = vunpack.c.l.b16 %v2281
        %v2433 = vunpack.c.l.b16 %v2282
        %v2434 = vunpack.c.l.b16 %v2283
        %v2435 = vunpack.c.l.b16 %v2284
        %v2436 = vunpack.c.l.b16 %v2285
        %v2437 = vunpack.c.l.b16 %v2286
        %v2438 = vunpack.c.l.b16 %v2287
        %v2439 = vunpack.c.l.b16 %v2288
        %v2440 = vunpack.c.l.b16 %v2289
        %v2441 = vunpack.c.l.b16 %v2290
        %v2442 = vunpack.c.l.b16 %v2291
        %v2443 = vunpack.c.l.b16 %v2292
        %v2444 = vunpack.c.l.b16 %v2293
        %v2445 = vunpack.c.l.b16 %v2294
        %v2446 = vunpack.c.l.b16 %v2295
        %v2447 = vunpack.c.l.b16 %v2296
        %v2448 = vunpack.c.l.b16 %v2297
        %v2449 = vunpack.c.l.b16 %v2298
        %v2450 = vunpack.c.l.b16 %v2299
        %v2451 = vunpack.c.l.b16 %v2300
        %v2452 = vunpack.c.l.b16 %v2301
        %v2453 = vunpack.c.l.b16 %v2302
        %v2454 = vunpack.c.l.b16 %v2303
        %v2455 = vunpack.c.l.b16 %v2304
        %v2456 = vunpack.c.l.b16 %v2305
        %v2457 = vunpack.c.l.b16 %v2306
        %v2458 = vunpack.c.l.b16 %v2307
        %v2459 = vunpack.c.l.b16 %v2308
        %v2460 = vunpack.c.l.b16 %v2309
        %v2461 = vpack.c.b16 %v2390, %v2389
        %v2462 = vpack.c.b16 %v2392, %v2391
        %v2463 = vpack.c.b16 %v2394, %v2393
        %v2464 = vpack.c.b16 %v2396, %v2395
        %v2465 = vpack.c.b16 %v2398, %v2397
        %v2466 = vpack.c.b16 %v2400, %v2399
        %v2467 = vpack.c.b16 %v2402, %v2401
        %v2468 = vpack.c.b16 %v2404, %v2403
        %v2469 = vpack.c.b16 %v2406, %v2405
        %v2470 = vpack.c.b16 %v2408, %v2407
        %v2471 = vpack.c.b16 %v2410, %v2409
        %v2472 = vpack.c.b16 %v2412, %v2411
        %v2473 = vpack.c.b16 %v2414, %v2413
        %v2474 = vpack.c.b16 %v2416, %v2415
        %v2475 = vpack.c.b16 %v2418, %v2417
        %v2476 = vpack.c.b16 %v2420, %v2419
        %v2477 = vpack.c.b16 %v2422, %v2421
        %v2478 = vpack.c.b16 %v2424, %v2423
        %v2479 = vpack.c.b16 %v2426, %v2425
        %v2480 = vpack.c.b16 %v2428, %v2427
        %v2481 = vpack.c.b16 %v2430, %v2429
        %v2482 = vpack.c.b16 %v2432, %v2431
        %v2483 = vpack.c.b16 %v2434, %v2433
        %v2484 = vpack.c.b16 %v2436, %v2435
        %v2485 = vpack.c.b16 %v2438, %v2437
        %v2486 = vpack.c.b16 %v2440, %v2439
        %v2487 = vpack.c.b16 %v2442, %v2441
        %v2488 = vpack.c.b16 %v2444, %v2443
        %v2489 = vpack.c.b16 %v2446, %v2445
        %v2490 = vpack.c.b16 %v2448, %v2447
        %v2491 = vpack.c.b16 %v2450, %v2449
        %v2492 = vpack.c.b16 %v2452, %v2451
        %v2493 = vpack.c.b16 %v2454, %v2453
        %v2494 = vpack.c.b16 %v2456, %v2455
        %v2495 = vpack.c.b16 %v2458, %v2457
        %v2496 = vpack.c.b16 %v2460, %v2459
        %v2534 = vsel %vm884, %v2170, 0
        %v2537 = vsel %vm884, %v2171, 0
        %v2540 = vsel %vm884, %v2172, 0
        %v2543 = vsel %vm884, %v2173, 0
        %2545 = vmatprep.subr.bf16.mxu0 0
        %2546 = vmatpush1.bf16.msra.mxu0 %v2468
        %2547 = vmatprep.subr.bf16.mxu0 0
        %2548 = vmatpush1.bf16.msra.mxu0 %v2467
        %2549 = vmatprep.subr.bf16.mxu0 0
        %2550 = vmatpush1.bf16.msra.mxu0 %v2466
        %2551 = vmatprep.subr.bf16.mxu0 0
        %2552 = vmatpush1.bf16.msra.mxu0 %v2465
        %2553 = vmatprep.subr.bf16.mxu0 0
        %2554 = vmatpush1.bf16.msra.mxu0 %v2464
        %2555 = vmatprep.subr.bf16.mxu0 0
        %2556 = vmatpush1.bf16.msra.mxu0 %v2463
        %2557 = vmatprep.subr.bf16.mxu0 0
        %2558 = vmatpush1.bf16.msra.mxu0 %v2462
        %2559 = vmatprep.subr.bf16.mxu0 0
        %2560 = vmatpush1.bf16.msra.mxu0 %v2461
        %2561 = vmatprep.subr.bf16.mxu0 0
        %2562 = vmatpush2.bf16.msra.mxu0 %v2476
        %2563 = vmatprep.subr.bf16.mxu0 0
        %2564 = vmatpush2.bf16.msra.mxu0 %v2475
        %2565 = vmatprep.subr.bf16.mxu0 0
        %2566 = vmatpush2.bf16.msra.mxu0 %v2474
        %2567 = vmatprep.subr.bf16.mxu0 0
        %2568 = vmatpush2.bf16.msra.mxu0 %v2473
        %2569 = vmatprep.subr.bf16.mxu0 0
        %2570 = vmatpush2.bf16.msra.mxu0 %v2472
        %2571 = vmatprep.subr.bf16.mxu0 0
        %2572 = vmatpush2.bf16.msra.mxu0 %v2471
        %2573 = vmatprep.subr.bf16.mxu0 0
        %2574 = vmatpush2.bf16.msra.mxu0 %v2470
        %2575 = vmatprep.subr.bf16.mxu0 0
        %2576 = vmatpush2.bf16.msra.mxu0 %v2469
        %2577 = vmatprep.mubr.bf16.mxu0 %v2192
        %2578 = vmatmul.mubr.bf16.gmra.mxu0 %v2176
        %v2579 = vpop.f32.mrf.mxu0
        %v2580 = vadd.f32 %v2315, %v2579
        %v2581 = vpop.f32.mrf.mxu0
        %v2582 = vpop.f32.mrf.mxu0
        %v2583 = vadd.f32 %v2315, %v2582
        %v2584 = vpop.f32.mrf.mxu0
        %2585 = vmatprep.mubr.bf16.mxu0 %v2196
        %2586 = vmatmul.mubr.bf16.gmra.mxu0 %v2180
        %v2587 = vpop.f32.mrf.mxu0
        %v2588 = vadd.f32 %v2315, %v2587
        %v2589 = vpop.f32.mrf.mxu0
        %v2590 = vpop.f32.mrf.mxu0
        %v2591 = vadd.f32 %v2315, %v2590
        %v2592 = vpop.f32.mrf.mxu0
        %2593 = vmatprep.mubr.bf16.mxu0 %v2200
        %2594 = vmatmul.mubr.bf16.gmra.mxu0 %v2184
        %v2595 = vpop.f32.mrf.mxu0
        %v2596 = vadd.f32 %v2315, %v2595
        %v2597 = vpop.f32.mrf.mxu0
        %v2598 = vpop.f32.mrf.mxu0
        %v2599 = vadd.f32 %v2315, %v2598
        %v2600 = vpop.f32.mrf.mxu0
        %2601 = vmatprep.mubr.bf16.mxu0 %v2204
        %2602 = vmatmul.mubr.bf16.gmra.mxu0 %v2188
        %v2603 = vpop.f32.mrf.mxu0
        %v2604 = vadd.f32 %v2315, %v2603
        %v2605 = vpop.f32.mrf.mxu0
        %v2606 = vpop.f32.mrf.mxu0
        %v2607 = vadd.f32 %v2315, %v2606
        %v2608 = vpop.f32.mrf.mxu0
        %2609 = vdwg.mxu0
        %2610 = vmatprep.subr.bf16.mxu0 0
        %2611 = vmatpush1.bf16.msra.mxu0 %v2484
        %2612 = vmatprep.subr.bf16.mxu0 0
        %2613 = vmatpush1.bf16.msra.mxu0 %v2483
        %2614 = vmatprep.subr.bf16.mxu0 0
        %2615 = vmatpush1.bf16.msra.mxu0 %v2482
        %2616 = vmatprep.subr.bf16.mxu0 0
        %2617 = vmatpush1.bf16.msra.mxu0 %v2481
        %2618 = vmatprep.subr.bf16.mxu0 0
        %2619 = vmatpush1.bf16.msra.mxu0 %v2480
        %2620 = vmatprep.subr.bf16.mxu0 0
        %2621 = vmatpush1.bf16.msra.mxu0 %v2479
        %2622 = vmatprep.subr.bf16.mxu0 0
        %2623 = vmatpush1.bf16.msra.mxu0 %v2478
        %2624 = vmatprep.subr.bf16.mxu0 0
        %2625 = vmatpush1.bf16.msra.mxu0 %v2477
        %2626 = vmatprep.subr.bf16.mxu0 0
        %2627 = vmatpush2.bf16.msra.mxu0 %v2492
        %2628 = vmatprep.subr.bf16.mxu0 0
        %2629 = vmatpush2.bf16.msra.mxu0 %v2491
        %2630 = vmatprep.subr.bf16.mxu0 0
        %2631 = vmatpush2.bf16.msra.mxu0 %v2490
        %2632 = vmatprep.subr.bf16.mxu0 0
        %2633 = vmatpush2.bf16.msra.mxu0 %v2489
        %2634 = vmatprep.subr.bf16.mxu0 0
        %2635 = vmatpush2.bf16.msra.mxu0 %v2488
        %2636 = vmatprep.subr.bf16.mxu0 0
        %2637 = vmatpush2.bf16.msra.mxu0 %v2487
        %2638 = vmatprep.subr.bf16.mxu0 0
        %2639 = vmatpush2.bf16.msra.mxu0 %v2486
        %2640 = vmatprep.subr.bf16.mxu0 0
        %2641 = vmatpush2.bf16.msra.mxu0 %v2485
        %2642 = vmatprep.mubr.bf16.mxu0 %v2224
        %2643 = vmatmul.mubr.bf16.gmra.mxu0 %v2208
        %v2644 = vpop.f32.mrf.mxu0
        %v2645 = vadd.f32 %v2580, %v2644
        %v2646 = vpop.f32.mrf.mxu0
        %v2647 = vpop.f32.mrf.mxu0
        %v2648 = vadd.f32 %v2583, %v2647
        %v2649 = vpop.f32.mrf.mxu0
        %2650 = vmatprep.mubr.bf16.mxu0 %v2228
        %2651 = vmatmul.mubr.bf16.gmra.mxu0 %v2212
        %v2652 = vpop.f32.mrf.mxu0
        %v2653 = vadd.f32 %v2588, %v2652
        %v2654 = vpop.f32.mrf.mxu0
        %v2655 = vpop.f32.mrf.mxu0
        %v2656 = vadd.f32 %v2591, %v2655
        %v2657 = vpop.f32.mrf.mxu0
        %2658 = vmatprep.mubr.bf16.mxu0 %v2232
        %2659 = vmatmul.mubr.bf16.gmra.mxu0 %v2216
        %v2660 = vpop.f32.mrf.mxu0
        %v2661 = vadd.f32 %v2596, %v2660
        %v2662 = vpop.f32.mrf.mxu0
        %v2663 = vpop.f32.mrf.mxu0
        %v2664 = vadd.f32 %v2599, %v2663
        %v2665 = vpop.f32.mrf.mxu0
        %2666 = vmatprep.mubr.bf16.mxu0 %v2236
        %2667 = vmatmul.mubr.bf16.gmra.mxu0 %v2220
        %v2668 = vpop.f32.mrf.mxu0
        %v2669 = vadd.f32 %v2604, %v2668
        %v2670 = vpop.f32.mrf.mxu0
        %v2671 = vpop.f32.mrf.mxu0
        %v2672 = vadd.f32 %v2607, %v2671
        %v2673 = vpop.f32.mrf.mxu0
        %2674 = vdwg.mxu0
        %2675 = vmatprep.subr.bf16.mxu0 0
        %2676 = vmatpush1.bf16.msra.mxu0 0
        %2677 = vmatprep.subr.bf16.mxu0 0
        %2678 = vmatpush1.bf16.msra.mxu0 0
        %2679 = vmatprep.subr.bf16.mxu0 0
        %2680 = vmatpush1.bf16.msra.mxu0 0
        %2681 = vmatprep.subr.bf16.mxu0 0
        %2682 = vmatpush1.bf16.msra.mxu0 0
        %2683 = vmatprep.subr.bf16.mxu0 0
        %2684 = vmatpush1.bf16.msra.mxu0 %v2496
        %2685 = vmatprep.subr.bf16.mxu0 0
        %2686 = vmatpush1.bf16.msra.mxu0 %v2495
        %2687 = vmatprep.subr.bf16.mxu0 0
        %2688 = vmatpush1.bf16.msra.mxu0 %v2494
        %2689 = vmatprep.subr.bf16.mxu0 0
        %2690 = vmatpush1.bf16.msra.mxu0 %v2493
        %2691 = vmatprep.subr.bf16.mxu0 0
        %2692 = vmatpush2.bf16.msra.mxu0 0
        %2693 = vmatprep.subr.bf16.mxu0 0
        %2694 = vmatpush2.bf16.msra.mxu0 0
        %2695 = vmatprep.subr.bf16.mxu0 0
        %2696 = vmatpush2.bf16.msra.mxu0 0
        %2697 = vmatprep.subr.bf16.mxu0 0
        %2698 = vmatpush2.bf16.msra.mxu0 0
        %2699 = vmatprep.subr.bf16.mxu0 0
        %2700 = vmatpush2.bf16.msra.mxu0 0
        %2701 = vmatprep.subr.bf16.mxu0 0
        %2702 = vmatpush2.bf16.msra.mxu0 0
        %2703 = vmatprep.subr.bf16.mxu0 0
        %2704 = vmatpush2.bf16.msra.mxu0 0
        %2705 = vmatprep.subr.bf16.mxu0 0
        %2706 = vmatpush2.bf16.msra.mxu0 0
        %2707 = vmatprep.mubr.bf16.mxu0 0
        %2708 = vmatmul.mubr.bf16.gmra.mxu0 %v2534
        %v2709 = vpop.f32.mrf.mxu0
        %v2710 = vadd.f32 %v2645, %v2709
        %v2711 = vpop.f32.mrf.mxu0
        %v2712 = vpop.f32.mrf.mxu0
        %v2713 = vadd.f32 %v2648, %v2712
        %v2714 = vpop.f32.mrf.mxu0
        %2715 = vmatprep.mubr.bf16.mxu0 0
        %2716 = vmatmul.mubr.bf16.gmra.mxu0 %v2537
        %v2717 = vpop.f32.mrf.mxu0
        %v2718 = vadd.f32 %v2653, %v2717
        %v2719 = vpop.f32.mrf.mxu0
        %v2720 = vpop.f32.mrf.mxu0
        %v2721 = vadd.f32 %v2656, %v2720
        %v2722 = vpop.f32.mrf.mxu0
        %2723 = vmatprep.mubr.bf16.mxu0 0
        %2724 = vmatmul.mubr.bf16.gmra.mxu0 %v2540
        %v2725 = vpop.f32.mrf.mxu0
        %v2726 = vadd.f32 %v2661, %v2725
        %v2727 = vpop.f32.mrf.mxu0
        %v2728 = vpop.f32.mrf.mxu0
        %v2729 = vadd.f32 %v2664, %v2728
        %v2730 = vpop.f32.mrf.mxu0
        %2731 = vmatprep.mubr.bf16.mxu0 0
        %2732 = vmatmul.mubr.bf16.gmra.mxu0 %v2543
        %v2733 = vpop.f32.mrf.mxu0
        %v2734 = vadd.f32 %v2669, %v2733
        %v2735 = vpop.f32.mrf.mxu0
        %v2736 = vpop.f32.mrf.mxu0
        %v2737 = vadd.f32 %v2672, %v2736
        %v2738 = vpop.f32.mrf.mxu0
        %2739 = vdwg.mxu0
        %v2740 = vld [vmem:[%s400] sm:$0xf]
        %v2741 = vld [vmem:[%s400 + $0x8] sm:$0xf]
        %v2742 = vld [vmem:[%s400 + $0x10] sm:$0xf]
        %v2743 = vld [vmem:[%s400 + $0x18] sm:$0xf]
        %v2744 = vld [vmem:[%s400 + $0x20] sm:$0xf]
        %v2745 = vld [vmem:[%s400 + $0x28] sm:$0xf]
        %v2746 = vld [vmem:[%s400 + $0x30] sm:$0xf]
        %v2747 = vld [vmem:[%s400 + $0x38] sm:$0xf]
        %v2748 = vld [vmem:[%s5] sm:$0xf]
        %v2749 = vld [vmem:[%s5 + $0x4] sm:$0xf]
        %v2750 = vld [vmem:[%s5 + $0x8] sm:$0xf]
        %v2751 = vld [vmem:[%s5 + $0xc] sm:$0xf]
        %v2760 = vunpack.c.l.b16 %v2740
        %v2761 = vunpack.c.l.b16 %v2741
        %v2762 = vunpack.c.l.b16 %v2742
        %v2763 = vunpack.c.l.b16 %v2743
        %v2764 = vunpack.c.l.b16 %v2744
        %v2765 = vunpack.c.l.b16 %v2745
        %v2766 = vunpack.c.l.b16 %v2746
        %v2767 = vunpack.c.l.b16 %v2747
        %v2768 = vpack.c.b16 %v2761, %v2760
        %v2769 = vpack.c.b16 %v2763, %v2762
        %v2770 = vpack.c.b16 %v2765, %v2764
        %v2771 = vpack.c.b16 %v2767, %v2766
        %v2776 = vunpack.c.l.b16 %v2748
        %v2777 = vunpack.c.l.b16 %v2749
        %v2778 = vunpack.c.l.b16 %v2750
        %v2779 = vunpack.c.l.b16 %v2751
        %v2780 = vpack.c.b16 %v2777, %v2776
        %v2781 = vpack.c.b16 %v2779, %v2778
        %v2785 = vsel %vm871, %v2768, 0
        %v2788 = vsel %vm871, %v2769, 0
        %v2791 = vsel %vm871, %v2770, 0
        %v2794 = vsel %vm871, %v2771, 0
        %2796 = vmatprep.subr.bf16.mxu0 0
        %2797 = vmatpush1.bf16.msra.mxu0 0
        %2798 = vmatprep.subr.bf16.mxu0 0
        %2799 = vmatpush1.bf16.msra.mxu0 0
        %2800 = vmatprep.subr.bf16.mxu0 0
        %2801 = vmatpush1.bf16.msra.mxu0 0
        %2802 = vmatprep.subr.bf16.mxu0 0
        %2803 = vmatpush1.bf16.msra.mxu0 0
        %2804 = vmatprep.subr.bf16.mxu0 0
        %2805 = vmatpush1.bf16.msra.mxu0 0
        %2806 = vmatprep.subr.bf16.mxu0 0
        %2807 = vmatpush1.bf16.msra.mxu0 0
        %2808 = vmatprep.subr.bf16.mxu0 0
        %2809 = vmatpush1.bf16.msra.mxu0 %v2781
        %2810 = vmatprep.subr.bf16.mxu0 0
        %2811 = vmatpush1.bf16.msra.mxu0 %v2780
        %2812 = vmatprep.subr.bf16.mxu0 0
        %2813 = vmatpush2.bf16.msra.mxu0 0
        %2814 = vmatprep.subr.bf16.mxu0 0
        %2815 = vmatpush2.bf16.msra.mxu0 0
        %2816 = vmatprep.subr.bf16.mxu0 0
        %2817 = vmatpush2.bf16.msra.mxu0 0
        %2818 = vmatprep.subr.bf16.mxu0 0
        %2819 = vmatpush2.bf16.msra.mxu0 0
        %2820 = vmatprep.subr.bf16.mxu0 0
        %2821 = vmatpush2.bf16.msra.mxu0 0
        %2822 = vmatprep.subr.bf16.mxu0 0
        %2823 = vmatpush2.bf16.msra.mxu0 0
        %2824 = vmatprep.subr.bf16.mxu0 0
        %2825 = vmatpush2.bf16.msra.mxu0 0
        %2826 = vmatprep.subr.bf16.mxu0 0
        %2827 = vmatpush2.bf16.msra.mxu0 0
        %2828 = vmatprep.mubr.bf16.mxu0 0
        %2829 = vmatmul.mubr.bf16.gmra.mxu0 %v2785
        %v2830 = vpop.f32.mrf.mxu0
        %v2831 = vadd.f32 0.0, %v2830
        %v2832 = vpop.f32.mrf.mxu0
        %v2833 = vpop.f32.mrf.mxu0
        %v2834 = vadd.f32 0.0, %v2833
        %v2835 = vpop.f32.mrf.mxu0
        %2836 = vmatprep.mubr.bf16.mxu0 0
        %2837 = vmatmul.mubr.bf16.gmra.mxu0 %v2788
        %v2838 = vpop.f32.mrf.mxu0
        %v2839 = vadd.f32 0.0, %v2838
        %v2840 = vpop.f32.mrf.mxu0
        %v2841 = vpop.f32.mrf.mxu0
        %v2842 = vadd.f32 0.0, %v2841
        %v2843 = vpop.f32.mrf.mxu0
        %2844 = vmatprep.mubr.bf16.mxu0 0
        %2845 = vmatmul.mubr.bf16.gmra.mxu0 %v2791
        %v2846 = vpop.f32.mrf.mxu0
        %v2847 = vadd.f32 0.0, %v2846
        %v2848 = vpop.f32.mrf.mxu0
        %v2849 = vpop.f32.mrf.mxu0
        %v2850 = vadd.f32 0.0, %v2849
        %v2851 = vpop.f32.mrf.mxu0
        %2852 = vmatprep.mubr.bf16.mxu0 0
        %2853 = vmatmul.mubr.bf16.gmra.mxu0 %v2794
        %v2854 = vpop.f32.mrf.mxu0
        %v2855 = vadd.f32 0.0, %v2854
        %v2856 = vpop.f32.mrf.mxu0
        %v2857 = vpop.f32.mrf.mxu0
        %v2858 = vadd.f32 0.0, %v2857
        %v2859 = vpop.f32.mrf.mxu0
        %2860 = vdwg.mxu0
        %v2861 = vadd.f32 %v2710, %v2831
        %v2862 = vadd.f32 %v2713, %v2834
        %v2863 = vadd.f32 %v2718, %v2839
        %v2864 = vadd.f32 %v2721, %v2842
        %v2865 = vadd.f32 %v2726, %v2847
        %v2866 = vadd.f32 %v2729, %v2850
        %v2867 = vadd.f32 %v2734, %v2855
        %v2868 = vadd.f32 %v2737, %v2858
        %v2869 = vpack.c.bf16 %v2861, %v2861
        %v2870 = vpack.c.bf16 %v2862, %v2862
        %v2871 = vpack.c.bf16 %v2863, %v2863
        %v2872 = vpack.c.bf16 %v2864, %v2864
        %v2873 = vpack.c.bf16 %v2865, %v2865
        %v2874 = vpack.c.bf16 %v2866, %v2866
        %v2875 = vpack.c.bf16 %v2867, %v2867
        %v2876 = vpack.c.bf16 %v2868, %v2868
        %2877 = vst.msk [vmem:[%s244] sm:$0xf] %vm1243, %v2869
        %2878 = vst.msk [vmem:[%s244 + $0x4] sm:$0xf] %vm1243, %v2870
        %2879 = vst.msk [vmem:[%s244 + $0x8] sm:$0xf] %vm1243, %v2871
        %2880 = vst.msk [vmem:[%s244 + $0xc] sm:$0xf] %vm1243, %v2872
        %2881 = vst.msk [vmem:[%s244 + $0x10] sm:$0xf] %vm1243, %v2873
        %2882 = vst.msk [vmem:[%s244 + $0x14] sm:$0xf] %vm1243, %v2874
        %2883 = vst.msk [vmem:[%s244 + $0x18] sm:$0xf] %vm1243, %v2875
        %2884 = vst.msk [vmem:[%s244 + $0x1c] sm:$0xf] %vm1243, %v2876
        %s2885 = sand.u32 %s159, 1
        %s2886 = scalar_lea.sflag [#allocation4], %s2885
        %s2887 = sand.u32 %s159, 1
        %s2888 = smul.addr %s2887, 32
        %s2889 = scalar_lea.vmem [#allocation3], %s2888
        // Predicated region
        $region45: #{basic_block_forward_nhwc.1} parent=43 // pred_check
          %p2890 = pneg %p169
        $region46: #{basic_block_forward_nhwc.1} parent=43 // pred_check_branch
          %2892 = sbr.rel (%p2890) target = $region48
        $region47: #{basic_block_forward_nhwc.1} parent=43 // pred_region
          %s2894 = ssub.s32 512, 512
          %2895 = vsyncadd %s2886, %s2894
          %s2896 = smul.addr %s20, 8
          %s2897 = smul.addr %s2896, 64
          %s2898 = scalar_lea.hbm %s6, %s2897
          %s2899 = sshll.u32 %s2889, 4
          %s2900 = int_to_ptr.vmem [resolvable:$true] %s2899
          %2905 = dma.vmem_to_hbm [thread:$0]  %s2900, 512, %s2898, %s2886, 64, 64, 4
        $region48: #{basic_block_forward_nhwc.1} parent=43 // pred_fallthru
          _
      $region44: #{basic_block_forward_nhwc.1} parent=5 // pred_fallthru
        _
      %p2906 = scmp.le.s32.totalorder 2, %s15
      // Predicated region
      $region49: #{basic_block_forward_nhwc.1} parent=5 // pred_check
        %p2907 = pneg %p2906
      $region50: #{basic_block_forward_nhwc.1} parent=5 // pred_check_branch
        %2909 = sbr.rel (%p2907) target = $region52
      $region51: #{basic_block_forward_nhwc.1} parent=5 // pred_region
        %s2910 = ssub.s32 %s15, 2
        // Predicated region
        $region53: #{basic_block_forward_nhwc.1} parent=51 // pred_check
          %p2911 = pneg %p175
        $region54: #{basic_block_forward_nhwc.1} parent=51 // pred_check_branch
          %2913 = sbr.rel (%p2911) target = $region56
        $region55: #{basic_block_forward_nhwc.1} parent=51 // pred_region
          %s2914 = sand.u32 %s160, 1
          %s2915 = scalar_lea.sflag [#allocation4], %s2914
          %s2916 = sand.u32 %s160, 1
          %s2917 = smul.addr %s2916, 32
          %s2918 = scalar_lea.vmem [#allocation3], %s2917
          %2919 = dma.done %s2915, 512
        $region56: #{basic_block_forward_nhwc.1} parent=51 // pred_fallthru
          _
      $region52: #{basic_block_forward_nhwc.1} parent=5 // pred_fallthru
        _
    $region6: #{basic_block_forward_nhwc.1} parent=1 // loop_footer
      %s19 = sadd.s32 1, %s15
    $region7: #{basic_block_forward_nhwc.1} parent=1 // loop_footer_branch
      %14 = sbr.rel target = $region3
    $region8: #{basic_block_forward_nhwc.1} parent=1 // loop_exit
      _
    %2920 = vsyncpa [#allocation4], 1
    %s2921 = scalar_lea.sflag [#allocation4], 1
    %2922 = vsyncpa %s2921, 1

</llo_original>
